<compile_context>
chip_gen: v7x
topology: tpu7x:2x2x1
jax: 0.10.0
libtpu: 0.0.40
codegen_flags: <defaults>
</compile_context>

<pallas_src>
import functools
import jax
import jax.numpy as jnp
from jax import lax
from jax.experimental import pallas as pl
from jax.experimental.pallas import tpu as pltpu

# ---- config (mirrors TransformerConfig) ----
N_HEADS = 4
N_EMBD = 32
HEAD_DIM = N_EMBD // N_HEADS
BLOCK_SIZE = 32                      # size of the registered attn_mask buffer (T must be <= 32)
SCALE = (1.0 / HEAD_DIM) ** 0.5


def mha_kernel(x_ref, wqkv_ref, bqkv_ref, wp_ref, bp_ref, o_ref, *, bblk, seq_len):
    # x_ref: (bblk*T, E) — batch*sequence rows flattened; maximizes MXU M dimension.
    n_rows = bblk * seq_len
    x = x_ref[...]                                               # (N, E)

    # Single fused Q|K|V projection: (N, E) @ (E, 3E) + (1, 3E).
    qkv = jnp.dot(x, wqkv_ref[...], preferred_element_type=jnp.float32) + bqkv_ref[...]

    # Additive causal bias, built once per invocation.  Large-negative instead of -inf so a
    # fully-masked row would still produce a finite softmax (robustness; free here).
    neg_big = jnp.finfo(jnp.float32).min
    row = lax.broadcasted_iota(jnp.int32, (seq_len, seq_len), 0)
    col = lax.broadcasted_iota(jnp.int32, (seq_len, seq_len), 1)
    causal_bias = jnp.where(col <= row, 0.0, neg_big).astype(jnp.float32)   # (T, T)

    # Per-head attention, batched over bblk; output projection folded into the head loop as
    # accumulated dots against sublane-aligned row slices of wp (no lane-dim concat).
    acc = jnp.zeros((n_rows, N_EMBD), jnp.float32)
    for h in range(N_HEADS):                                     # static unroll over heads
        q_lo = h * HEAD_DIM
        k_lo = N_EMBD + h * HEAD_DIM
        v_lo = 2 * N_EMBD + h * HEAD_DIM
        qh = qkv[:, q_lo:q_lo + HEAD_DIM].reshape(bblk, seq_len, HEAD_DIM)
        kh = qkv[:, k_lo:k_lo + HEAD_DIM].reshape(bblk, seq_len, HEAD_DIM)
        vh = qkv[:, v_lo:v_lo + HEAD_DIM].reshape(bblk, seq_len, HEAD_DIM)

        s = jnp.einsum('bqd,bkd->bqk', qh, kh,
                       preferred_element_type=jnp.float32) * SCALE + causal_bias
        m = jnp.max(s, axis=-1, keepdims=True)
        e = jnp.exp(s - m)
        p = e / jnp.sum(e, axis=-1, keepdims=True)               # exact divide (negligible cost)

        oh = jnp.einsum('bqk,bkd->bqd', p, vh,
                        preferred_element_type=jnp.float32).reshape(n_rows, HEAD_DIM)
        # wp row slice is sublane-aligned (HEAD_DIM == 8) -> free; accumulate projection.
        acc = acc + jnp.dot(oh, wp_ref[h * HEAD_DIM:(h + 1) * HEAD_DIM, :],
                            preferred_element_type=jnp.float32)

    o_ref[...] = acc + bp_ref[...]


def _cost_estimate(B, T, E):
    n = B * T
    flops = (2 * n * E * (3 * E)            # fused QKV projection
             + 4 * B * N_HEADS * T * T * HEAD_DIM   # QK^T and PV einsums
             + 2 * n * E * E)               # output projection (accumulated per head)
    transcendentals = B * N_HEADS * T * T   # exp in softmax
    bytes_accessed = 4 * (2 * n * E         # x in, out
                          + E * 3 * E + 3 * E   # wqkv, bqkv
                          + E * E + E)      # wp, bp
    return pl.CostEstimate(flops=flops, transcendentals=transcendentals,
                           bytes_accessed=bytes_accessed)


def multi_head_attention(x, params, *, bblk=None):
    """params = [wq, bq, wk, bk, wv, bv, wp, bp] with shapes (E,E)/(1,E)."""
    wq, bq, wk, bk, wv, bv, wp, bp = params
    B, T, E = x.shape
    assert E == N_EMBD and T <= BLOCK_SIZE
    if bblk is None:
        # One fused call: best on every generation at small B.  Do NOT shard tiny batches
        # across v7x's two TensorCores — only split once bblk*T reaches hundreds of rows.
        bblk = B
    assert B % bblk == 0

    # Wrapper-side packing (tiny one-time XLA ops): fused QKV weight/bias.
    wqkv = jnp.concatenate([wq, wk, wv], axis=1)      # (E, 3E)
    bqkv = jnp.concatenate([bq, bk, bv], axis=1)      # (1, 3E)
    x_rows = x.reshape(B * T, E)                      # flatten batch*seq rows (free)

    kernel = functools.partial(mha_kernel, bblk=bblk, seq_len=T)
    cost = _cost_estimate(B, T, E)
    out_shape = jax.ShapeDtypeStruct((B * T, E), x.dtype)

    if bblk == B:
        # Grid-less path: whole problem in one kernel body, operands DMA'd straight to VMEM.
        vmem_spec = pl.BlockSpec(memory_space=pltpu.MemorySpace.VMEM)
        out = pl.pallas_call(
            kernel,
            out_shape=out_shape,
            in_specs=[vmem_spec] * 5,
            out_specs=vmem_spec,
            cost_estimate=cost,
        )(x_rows, wqkv, bqkv, wp, bp)
    else:
        # Pipelined grid path (only useful for large B, e.g. sharding across v7x's 2 TCs).
        # BlockSpec (8,128) rule: rows per block must be a multiple of 8.
        assert (bblk * T) % 8 == 0, "bblk*T must be a multiple of 8 for the grid path"

        def weight_spec(p):
            nd = p.ndim
            return pl.BlockSpec(p.shape, lambda i, _nd=nd: (0,) * _nd)   # resident across steps

        out = pl.pallas_call(
            kernel,
            out_shape=out_shape,
            grid=(B // bblk,),
            in_specs=[pl.BlockSpec((bblk * T, E), lambda i: (i, 0)),
                      weight_spec(wqkv), weight_spec(bqkv),
                      weight_spec(wp), weight_spec(bp)],
            out_specs=pl.BlockSpec((bblk * T, E), lambda i: (i, 0)),
            compiler_params=pltpu.CompilerParams(dimension_semantics=("parallel",)),
            cost_estimate=cost,
        )(x_rows, wqkv, bqkv, wp, bp)
        # TODO(synk): when scaling bblk up, budget VMEM explicitly (v7x has 64 MiB/TC vs
        # 128 MiB on v5e/v6e) and set vmem_limit_bytes in CompilerParams.

    return out.reshape(B, T, E)


def reference(x, params):
    """Pure-JAX mirror of the PyTorch MultiHeadAttention forward, for correctness checking."""
    wq, bq, wk, bk, wv, bv, wp, bp = params
    B, T, E = x.shape
    q = x @ wq + bq
    k = x @ wk + bk
    v = x @ wv + bv
    qh = q.reshape(B, T, N_HEADS, HEAD_DIM).transpose(0, 2, 1, 3)
    kh = k.reshape(B, T, N_HEADS, HEAD_DIM).transpose(0, 2, 1, 3)
    vh = v.reshape(B, T, N_HEADS, HEAD_DIM).transpose(0, 2, 1, 3)
    s = jnp.einsum("bhqd,bhkd->bhqk", qh, kh) * SCALE
    mask = jnp.tril(jnp.ones((T, T), bool))
    s = jnp.where(mask, s, -jnp.inf)
    p = jax.nn.softmax(s, -1)
    o = jnp.einsum("bhqk,bhkd->bhqd", p, vh).transpose(0, 2, 1, 3).reshape(B, T, E)
    return o @ wp + bp


if __name__ == "__main__":
    B, T = 2, 8
    key = jax.random.PRNGKey(0)
    keys = jax.random.split(key, 9)

    def w(k, shape, scale=0.05):
        return scale * jax.random.normal(k, shape, jnp.float32)

    params = [
        w(keys[0], (N_EMBD, N_EMBD)), w(keys[1], (1, N_EMBD)),   # q  (heads packed column-wise)
        w(keys[2], (N_EMBD, N_EMBD)), w(keys[3], (1, N_EMBD)),   # k
        w(keys[4], (N_EMBD, N_EMBD)), w(keys[5], (1, N_EMBD)),   # v
        w(keys[6], (N_EMBD, N_EMBD)), w(keys[7], (1, N_EMBD)),   # output projection
    ]
    x = jax.random.normal(keys[8], (B, T, N_EMBD), jnp.float32)

    out = jax.block_until_ready(multi_head_attention(x, params))
    ref = reference(x, params)
    assert out.shape == (B, T, N_EMBD)
    assert jnp.allclose(out, ref, atol=1e-3, rtol=1e-3), "mismatch vs pure-JAX reference"
    print("KERNEL_OK")
</pallas_src>

<mosaic_0001>
module attributes {stable_mosaic.version = 11 : i64} {
  func.func @mha_kernel(%arg0: memref<16x32xf32, #tpu.memory_space<vmem>>, %arg1: memref<32x96xf32, #tpu.memory_space<vmem>>, %arg2: memref<1x96xf32, #tpu.memory_space<vmem>>, %arg3: memref<32x32xf32, #tpu.memory_space<vmem>>, %arg4: memref<1x32xf32, #tpu.memory_space<vmem>>, %arg5: memref<16x32xf32, #tpu.memory_space<vmem>>) attributes {dimension_semantics = [], scalar_prefetch = 0 : i64, scratch_operands = 0 : i64, tpu.core_type = #tpu.core_type<tc>} {
    %c0 = arith.constant 0 : index
    %c0_0 = arith.constant 0 : index
    %0 = vector.load %arg0[%c0, %c0_0] : memref<16x32xf32, #tpu.memory_space<vmem>>, vector<16x32xf32>
    %c0_1 = arith.constant 0 : index
    %c0_2 = arith.constant 0 : index
    %1 = vector.load %arg1[%c0_1, %c0_2] : memref<32x96xf32, #tpu.memory_space<vmem>>, vector<32x96xf32>
    %cst = arith.constant dense<0.000000e+00> : vector<16x96xf32>
    %2 = tpu.matmul %0, %1, %cst {dimension_numbers = #tpu.dot_dimension_numbers<[1], [0], [0], [1], [0, 0, 1, 1], [], []>} : vector<16x32xf32>, vector<32x96xf32>, vector<16x96xf32> -> vector<16x96xf32>
    %c0_3 = arith.constant 0 : index
    %c0_4 = arith.constant 0 : index
    %3 = vector.load %arg2[%c0_3, %c0_4] : memref<1x96xf32, #tpu.memory_space<vmem>>, vector<1x96xf32>
    %4 = vector.broadcast %3 : vector<1x96xf32> to vector<16x96xf32>
    %5 = arith.addf %2, %4 : vector<16x96xf32>
    %6 = tpu.iota {dimensions = array<i32: 0>} : vector<8x8xi32>
    %7 = tpu.iota {dimensions = array<i32: 1>} : vector<8x8xi32>
    %8 = arith.cmpi sle, %7, %6 : vector<8x8xi32>
    %cst_5 = arith.constant 0.000000e+00 : f32
    %cst_6 = arith.constant -3.40282347E+38 : f32
    %9 = vector.broadcast %cst_5 : f32 to vector<8x8xf32>
    %10 = vector.broadcast %cst_6 : f32 to vector<8x8xf32>
    %11 = arith.select %8, %9, %10 : vector<8x8xi1>, vector<8x8xf32>
    %cst_7 = arith.constant 0.000000e+00 : f32
    %12 = vector.broadcast %cst_7 : f32 to vector<16x32xf32>
    %13 = vector.extract_strided_slice %5 {offsets = [0, 0], sizes = [16, 8], strides = [1, 1]} : vector<16x96xf32> to vector<16x8xf32>
    %14 = vector.shape_cast %13 : vector<16x8xf32> to vector<2x8x8xf32>
    %15 = vector.extract_strided_slice %5 {offsets = [0, 32], sizes = [16, 8], strides = [1, 1]} : vector<16x96xf32> to vector<16x8xf32>
    %16 = vector.shape_cast %15 : vector<16x8xf32> to vector<2x8x8xf32>
    %17 = vector.extract_strided_slice %5 {offsets = [0, 64], sizes = [16, 8], strides = [1, 1]} : vector<16x96xf32> to vector<16x8xf32>
    %18 = vector.shape_cast %17 : vector<16x8xf32> to vector<2x8x8xf32>
    "tpu.trace_start"() <{level = 10 : i32, message = "bqd,bkd->bqk"}> : () -> ()
    %cst_8 = arith.constant dense<0.000000e+00> : vector<2x8x8xf32>
    %19 = tpu.matmul %14, %16, %cst_8 {dimension_numbers = #tpu.dot_dimension_numbers<[2], [2], [1], [1], [0, 0, 0, 1, 1, 1], [0], [0]>} : vector<2x8x8xf32>, vector<2x8x8xf32>, vector<2x8x8xf32> -> vector<2x8x8xf32>
    "tpu.trace_stop"() : () -> ()
    %cst_9 = arith.constant 0.353553385 : f32
    %20 = vector.broadcast %cst_9 : f32 to vector<2x8x8xf32>
    %21 = arith.mulf %19, %20 : vector<2x8x8xf32>
    %22 = vector.shape_cast %11 : vector<8x8xf32> to vector<1x8x8xf32>
    %23 = vector.broadcast %22 : vector<1x8x8xf32> to vector<2x8x8xf32>
    %24 = arith.addf %21, %23 : vector<2x8x8xf32>
    %cst_10 = arith.constant dense<0xFF800000> : vector<2x8xf32>
    %25 = vector.multi_reduction <maximumf>, %24, %cst_10 [2] : vector<2x8x8xf32> to vector<2x8xf32>
    %26 = vector.shape_cast %25 : vector<2x8xf32> to vector<2x8x1xf32>
    %27 = vector.broadcast %26 : vector<2x8x1xf32> to vector<2x8x8xf32>
    %28 = arith.subf %24, %27 : vector<2x8x8xf32>
    %29 = math.exp %28 : vector<2x8x8xf32>
    %cst_11 = arith.constant dense<0.000000e+00> : vector<2x8xf32>
    %30 = vector.multi_reduction <add>, %29, %cst_11 [2] : vector<2x8x8xf32> to vector<2x8xf32>
    %31 = vector.shape_cast %30 : vector<2x8xf32> to vector<2x8x1xf32>
    %32 = vector.broadcast %31 : vector<2x8x1xf32> to vector<2x8x8xf32>
    %33 = arith.divf %29, %32 : vector<2x8x8xf32>
    "tpu.trace_start"() <{level = 10 : i32, message = "bqk,bkd->bqd"}> : () -> ()
    %cst_12 = arith.constant dense<0.000000e+00> : vector<2x8x8xf32>
    %34 = tpu.matmul %33, %18, %cst_12 {dimension_numbers = #tpu.dot_dimension_numbers<[2], [1], [1], [2], [0, 0, 0, 1, 1, 2], [0], [0]>} : vector<2x8x8xf32>, vector<2x8x8xf32>, vector<2x8x8xf32> -> vector<2x8x8xf32>
    "tpu.trace_stop"() : () -> ()
    %35 = vector.shape_cast %34 : vector<2x8x8xf32> to vector<16x8xf32>
    %c0_13 = arith.constant 0 : index
    %c0_14 = arith.constant 0 : index
    %36 = vector.load %arg3[%c0_13, %c0_14] : memref<32x32xf32, #tpu.memory_space<vmem>>, vector<8x32xf32>
    %cst_15 = arith.constant dense<0.000000e+00> : vector<16x32xf32>
    %37 = tpu.matmul %35, %36, %cst_15 {dimension_numbers = #tpu.dot_dimension_numbers<[1], [0], [0], [1], [0, 0, 1, 1], [], []>} : vector<16x8xf32>, vector<8x32xf32>, vector<16x32xf32> -> vector<16x32xf32>
    %38 = arith.addf %12, %37 : vector<16x32xf32>
    %39 = vector.extract_strided_slice %5 {offsets = [0, 8], sizes = [16, 8], strides = [1, 1]} : vector<16x96xf32> to vector<16x8xf32>
    %40 = vector.shape_cast %39 : vector<16x8xf32> to vector<2x8x8xf32>
    %41 = vector.extract_strided_slice %5 {offsets = [0, 40], sizes = [16, 8], strides = [1, 1]} : vector<16x96xf32> to vector<16x8xf32>
    %42 = vector.shape_cast %41 : vector<16x8xf32> to vector<2x8x8xf32>
    %43 = vector.extract_strided_slice %5 {offsets = [0, 72], sizes = [16, 8], strides = [1, 1]} : vector<16x96xf32> to vector<16x8xf32>
    %44 = vector.shape_cast %43 : vector<16x8xf32> to vector<2x8x8xf32>
    "tpu.trace_start"() <{level = 10 : i32, message = "bqd,bkd->bqk"}> : () -> ()
    %cst_16 = arith.constant dense<0.000000e+00> : vector<2x8x8xf32>
    %45 = tpu.matmul %40, %42, %cst_16 {dimension_numbers = #tpu.dot_dimension_numbers<[2], [2], [1], [1], [0, 0, 0, 1, 1, 1], [0], [0]>} : vector<2x8x8xf32>, vector<2x8x8xf32>, vector<2x8x8xf32> -> vector<2x8x8xf32>
    "tpu.trace_stop"() : () -> ()
    %cst_17 = arith.constant 0.353553385 : f32
    %46 = vector.broadcast %cst_17 : f32 to vector<2x8x8xf32>
    %47 = arith.mulf %45, %46 : vector<2x8x8xf32>
    %48 = vector.shape_cast %11 : vector<8x8xf32> to vector<1x8x8xf32>
    %49 = vector.broadcast %48 : vector<1x8x8xf32> to vector<2x8x8xf32>
    %50 = arith.addf %47, %49 : vector<2x8x8xf32>
    %cst_18 = arith.constant dense<0xFF800000> : vector<2x8xf32>
    %51 = vector.multi_reduction <maximumf>, %50, %cst_18 [2] : vector<2x8x8xf32> to vector<2x8xf32>
    %52 = vector.shape_cast %51 : vector<2x8xf32> to vector<2x8x1xf32>
    %53 = vector.broadcast %52 : vector<2x8x1xf32> to vector<2x8x8xf32>
    %54 = arith.subf %50, %53 : vector<2x8x8xf32>
    %55 = math.exp %54 : vector<2x8x8xf32>
    %cst_19 = arith.constant dense<0.000000e+00> : vector<2x8xf32>
    %56 = vector.multi_reduction <add>, %55, %cst_19 [2] : vector<2x8x8xf32> to vector<2x8xf32>
    %57 = vector.shape_cast %56 : vector<2x8xf32> to vector<2x8x1xf32>
    %58 = vector.broadcast %57 : vector<2x8x1xf32> to vector<2x8x8xf32>
    %59 = arith.divf %55, %58 : vector<2x8x8xf32>
    "tpu.trace_start"() <{level = 10 : i32, message = "bqk,bkd->bqd"}> : () -> ()
    %cst_20 = arith.constant dense<0.000000e+00> : vector<2x8x8xf32>
    %60 = tpu.matmul %59, %44, %cst_20 {dimension_numbers = #tpu.dot_dimension_numbers<[2], [1], [1], [2], [0, 0, 0, 1, 1, 2], [0], [0]>} : vector<2x8x8xf32>, vector<2x8x8xf32>, vector<2x8x8xf32> -> vector<2x8x8xf32>
    "tpu.trace_stop"() : () -> ()
    %61 = vector.shape_cast %60 : vector<2x8x8xf32> to vector<16x8xf32>
    %c8 = arith.constant 8 : index
    %c0_21 = arith.constant 0 : index
    %62 = vector.load %arg3[%c8, %c0_21] : memref<32x32xf32, #tpu.memory_space<vmem>>, vector<8x32xf32>
    %cst_22 = arith.constant dense<0.000000e+00> : vector<16x32xf32>
    %63 = tpu.matmul %61, %62, %cst_22 {dimension_numbers = #tpu.dot_dimension_numbers<[1], [0], [0], [1], [0, 0, 1, 1], [], []>} : vector<16x8xf32>, vector<8x32xf32>, vector<16x32xf32> -> vector<16x32xf32>
    %64 = arith.addf %38, %63 : vector<16x32xf32>
    %65 = vector.extract_strided_slice %5 {offsets = [0, 16], sizes = [16, 8], strides = [1, 1]} : vector<16x96xf32> to vector<16x8xf32>
    %66 = vector.shape_cast %65 : vector<16x8xf32> to vector<2x8x8xf32>
    %67 = vector.extract_strided_slice %5 {offsets = [0, 48], sizes = [16, 8], strides = [1, 1]} : vector<16x96xf32> to vector<16x8xf32>
    %68 = vector.shape_cast %67 : vector<16x8xf32> to vector<2x8x8xf32>
    %69 = vector.extract_strided_slice %5 {offsets = [0, 80], sizes = [16, 8], strides = [1, 1]} : vector<16x96xf32> to vector<16x8xf32>
    %70 = vector.shape_cast %69 : vector<16x8xf32> to vector<2x8x8xf32>
    "tpu.trace_start"() <{level = 10 : i32, message = "bqd,bkd->bqk"}> : () -> ()
    %cst_23 = arith.constant dense<0.000000e+00> : vector<2x8x8xf32>
    %71 = tpu.matmul %66, %68, %cst_23 {dimension_numbers = #tpu.dot_dimension_numbers<[2], [2], [1], [1], [0, 0, 0, 1, 1, 1], [0], [0]>} : vector<2x8x8xf32>, vector<2x8x8xf32>, vector<2x8x8xf32> -> vector<2x8x8xf32>
    "tpu.trace_stop"() : () -> ()
    %cst_24 = arith.constant 0.353553385 : f32
    %72 = vector.broadcast %cst_24 : f32 to vector<2x8x8xf32>
    %73 = arith.mulf %71, %72 : vector<2x8x8xf32>
    %74 = vector.shape_cast %11 : vector<8x8xf32> to vector<1x8x8xf32>
    %75 = vector.broadcast %74 : vector<1x8x8xf32> to vector<2x8x8xf32>
    %76 = arith.addf %73, %75 : vector<2x8x8xf32>
    %cst_25 = arith.constant dense<0xFF800000> : vector<2x8xf32>
    %77 = vector.multi_reduction <maximumf>, %76, %cst_25 [2] : vector<2x8x8xf32> to vector<2x8xf32>
    %78 = vector.shape_cast %77 : vector<2x8xf32> to vector<2x8x1xf32>
    %79 = vector.broadcast %78 : vector<2x8x1xf32> to vector<2x8x8xf32>
    %80 = arith.subf %76, %79 : vector<2x8x8xf32>
    %81 = math.exp %80 : vector<2x8x8xf32>
    %cst_26 = arith.constant dense<0.000000e+00> : vector<2x8xf32>
    %82 = vector.multi_reduction <add>, %81, %cst_26 [2] : vector<2x8x8xf32> to vector<2x8xf32>
    %83 = vector.shape_cast %82 : vector<2x8xf32> to vector<2x8x1xf32>
    %84 = vector.broadcast %83 : vector<2x8x1xf32> to vector<2x8x8xf32>
    %85 = arith.divf %81, %84 : vector<2x8x8xf32>
    "tpu.trace_start"() <{level = 10 : i32, message = "bqk,bkd->bqd"}> : () -> ()
    %cst_27 = arith.constant dense<0.000000e+00> : vector<2x8x8xf32>
    %86 = tpu.matmul %85, %70, %cst_27 {dimension_numbers = #tpu.dot_dimension_numbers<[2], [1], [1], [2], [0, 0, 0, 1, 1, 2], [0], [0]>} : vector<2x8x8xf32>, vector<2x8x8xf32>, vector<2x8x8xf32> -> vector<2x8x8xf32>
    "tpu.trace_stop"() : () -> ()
    %87 = vector.shape_cast %86 : vector<2x8x8xf32> to vector<16x8xf32>
    %c16 = arith.constant 16 : index
    %c0_28 = arith.constant 0 : index
    %88 = vector.load %arg3[%c16, %c0_28] : memref<32x32xf32, #tpu.memory_space<vmem>>, vector<8x32xf32>
    %cst_29 = arith.constant dense<0.000000e+00> : vector<16x32xf32>
    %89 = tpu.matmul %87, %88, %cst_29 {dimension_numbers = #tpu.dot_dimension_numbers<[1], [0], [0], [1], [0, 0, 1, 1], [], []>} : vector<16x8xf32>, vector<8x32xf32>, vector<16x32xf32> -> vector<16x32xf32>
    %90 = arith.addf %64, %89 : vector<16x32xf32>
    %91 = vector.extract_strided_slice %5 {offsets = [0, 24], sizes = [16, 8], strides = [1, 1]} : vector<16x96xf32> to vector<16x8xf32>
    %92 = vector.shape_cast %91 : vector<16x8xf32> to vector<2x8x8xf32>
    %93 = vector.extract_strided_slice %5 {offsets = [0, 56], sizes = [16, 8], strides = [1, 1]} : vector<16x96xf32> to vector<16x8xf32>
    %94 = vector.shape_cast %93 : vector<16x8xf32> to vector<2x8x8xf32>
    %95 = vector.extract_strided_slice %5 {offsets = [0, 88], sizes = [16, 8], strides = [1, 1]} : vector<16x96xf32> to vector<16x8xf32>
    %96 = vector.shape_cast %95 : vector<16x8xf32> to vector<2x8x8xf32>
    "tpu.trace_start"() <{level = 10 : i32, message = "bqd,bkd->bqk"}> : () -> ()
    %cst_30 = arith.constant dense<0.000000e+00> : vector<2x8x8xf32>
    %97 = tpu.matmul %92, %94, %cst_30 {dimension_numbers = #tpu.dot_dimension_numbers<[2], [2], [1], [1], [0, 0, 0, 1, 1, 1], [0], [0]>} : vector<2x8x8xf32>, vector<2x8x8xf32>, vector<2x8x8xf32> -> vector<2x8x8xf32>
    "tpu.trace_stop"() : () -> ()
    %cst_31 = arith.constant 0.353553385 : f32
    %98 = vector.broadcast %cst_31 : f32 to vector<2x8x8xf32>
    %99 = arith.mulf %97, %98 : vector<2x8x8xf32>
    %100 = vector.shape_cast %11 : vector<8x8xf32> to vector<1x8x8xf32>
    %101 = vector.broadcast %100 : vector<1x8x8xf32> to vector<2x8x8xf32>
    %102 = arith.addf %99, %101 : vector<2x8x8xf32>
    %cst_32 = arith.constant dense<0xFF800000> : vector<2x8xf32>
    %103 = vector.multi_reduction <maximumf>, %102, %cst_32 [2] : vector<2x8x8xf32> to vector<2x8xf32>
    %104 = vector.shape_cast %103 : vector<2x8xf32> to vector<2x8x1xf32>
    %105 = vector.broadcast %104 : vector<2x8x1xf32> to vector<2x8x8xf32>
    %106 = arith.subf %102, %105 : vector<2x8x8xf32>
    %107 = math.exp %106 : vector<2x8x8xf32>
    %cst_33 = arith.constant dense<0.000000e+00> : vector<2x8xf32>
    %108 = vector.multi_reduction <add>, %107, %cst_33 [2] : vector<2x8x8xf32> to vector<2x8xf32>
    %109 = vector.shape_cast %108 : vector<2x8xf32> to vector<2x8x1xf32>
    %110 = vector.broadcast %109 : vector<2x8x1xf32> to vector<2x8x8xf32>
    %111 = arith.divf %107, %110 : vector<2x8x8xf32>
    "tpu.trace_start"() <{level = 10 : i32, message = "bqk,bkd->bqd"}> : () -> ()
    %cst_34 = arith.constant dense<0.000000e+00> : vector<2x8x8xf32>
    %112 = tpu.matmul %111, %96, %cst_34 {dimension_numbers = #tpu.dot_dimension_numbers<[2], [1], [1], [2], [0, 0, 0, 1, 1, 2], [0], [0]>} : vector<2x8x8xf32>, vector<2x8x8xf32>, vector<2x8x8xf32> -> vector<2x8x8xf32>
    "tpu.trace_stop"() : () -> ()
    %113 = vector.shape_cast %112 : vector<2x8x8xf32> to vector<16x8xf32>
    %c24 = arith.constant 24 : index
    %c0_35 = arith.constant 0 : index
    %114 = vector.load %arg3[%c24, %c0_35] : memref<32x32xf32, #tpu.memory_space<vmem>>, vector<8x32xf32>
    %cst_36 = arith.constant dense<0.000000e+00> : vector<16x32xf32>
    %115 = tpu.matmul %113, %114, %cst_36 {dimension_numbers = #tpu.dot_dimension_numbers<[1], [0], [0], [1], [0, 0, 1, 1], [], []>} : vector<16x8xf32>, vector<8x32xf32>, vector<16x32xf32> -> vector<16x32xf32>
    %116 = arith.addf %90, %115 : vector<16x32xf32>
    %c0_37 = arith.constant 0 : index
    %c0_38 = arith.constant 0 : index
    %117 = vector.load %arg4[%c0_37, %c0_38] : memref<1x32xf32, #tpu.memory_space<vmem>>, vector<1x32xf32>
    %118 = vector.broadcast %117 : vector<1x32xf32> to vector<16x32xf32>
    %119 = arith.addf %116, %118 : vector<16x32xf32>
    %c0_39 = arith.constant 0 : index
    %c0_40 = arith.constant 0 : index
    %120 = vector.load %arg5[%c0_39, %c0_40] : memref<16x32xf32, #tpu.memory_space<vmem>>, vector<16x32xf32>
    tpu.vector_store %arg5[%c0_39, %c0_40], %119 {strides = array<i32>} : memref<16x32xf32, #tpu.memory_space<vmem>>, vector<16x32xf32>,
    return
  }
}

</mosaic_0001>

<llo_original>
// kernel: tpu_custom_call.1
$region0: #{tpu_custom_call.1}
  #allocation0 [shape = 'u32[]', space=smem, size = 0x4, offset = 0x4, fixed_abs, tag = 'smem constant byte address 0x4 - core index']
  #allocation1 [shape = 'u32[144,128]{1,0:T(1,128)}', space=vmem, size = 0x12000, scoped, tag = 'internal scratch']
  %s0 = inlined_call_operand.hbm [shape: f32[16,32], index: 0, kind: input, shape index: {}]
  %s1 = inlined_call_operand.hbm [shape: f32[32,96], index: 1, kind: input, shape index: {}]
  %s2 = inlined_call_operand.vmem [shape: f32[1,96], index: 2, kind: input, shape index: {}]
  %s3 = inlined_call_operand.hbm [shape: f32[32,32], index: 3, kind: input, shape index: {}]
  %s4 = inlined_call_operand.vmem [shape: f32[1,32], index: 4, kind: input, shape index: {}]
  %s5 = inlined_call_operand.hbm [shape: f32[16,32], index: 5, kind: output, shape index: {}]
  %s6 = sld [smem:[#allocation0]]
  $region42: #{tpu_custom_call.1} parent=0
    _
  %s8 = ssub.s32 1, %s6
  %s9 = scalar_select 0, %s8, %s6
  $region1: #{tpu_custom_call.1} parent=0
    #allocation2 [shape = 'u8[8192]{0}', space=vmem, size = 0x2000, scoped, tag = 'input window, operand 0, single buffered']
    #allocation3 [shape = 's32[1]{0}', space=sflag, size = 0x4, scoped, tag = 'scoped memory for tpu_custom_call.1']
    #allocation4 [shape = 's32[1]{0}', space=sflag, size = 0x4, scoped, tag = 'scoped memory for tpu_custom_call.1']
    #allocation5 [shape = 'u8[16384]{0}', space=vmem, size = 0x4000, scoped, tag = 'input window, operand 1, single buffered']
    #allocation6 [shape = 's32[1]{0}', space=sflag, size = 0x4, scoped, tag = 'scoped memory for tpu_custom_call.1']
    #allocation7 [shape = 'u8[16384]{0}', space=vmem, size = 0x4000, scoped, tag = 'input window, operand 3, single buffered']
    #allocation8 [shape = 'u8[8192]{0}', space=vmem, size = 0x2000, scoped, tag = 'output window, operand 0, single buffered']
    %10 = vsyncpa [#allocation3], 0
    %11 = vsyncpa [#allocation6], 0
    %12 = vsyncpa [#allocation4], 0
    // Predicated region
    $region2: #{tpu_custom_call.1} parent=1 // pred_check
      _
    $region3: #{tpu_custom_call.1} parent=1 // pred_check_branch
      %14 = sbr.rel (0) target = $region5
    $region4: #{tpu_custom_call.1} parent=1 // pred_region
      %s16 = ssub.s32 256, 256
      %17 = vsyncadd [#allocation3], %s16
      %s18 = sshll.u32 [#allocation2], 4
      %s19 = int_to_ptr.vmem [resolvable:$true] %s18
      %24 = dma.hbm_to_vmem [thread:$0]  %s0, 256, %s19, [#allocation3], 128, 128, 8
    $region5: #{tpu_custom_call.1} parent=1 // pred_fallthru
      _
    // Predicated region
    $region6: #{tpu_custom_call.1} parent=1 // pred_check
      _
    $region7: #{tpu_custom_call.1} parent=1 // pred_check_branch
      %26 = sbr.rel (0) target = $region9
    $region8: #{tpu_custom_call.1} parent=1 // pred_region
      %s28 = ssub.s32 512, 512
      %29 = vsyncadd [#allocation6], %s28
      %s30 = sshll.u32 [#allocation5], 4
      %s31 = int_to_ptr.vmem [resolvable:$true] %s30
      %36 = dma.hbm_to_vmem [thread:$0]  %s1, 512, %s31, [#allocation6], 128, 128, 8
    $region9: #{tpu_custom_call.1} parent=1 // pred_fallthru
      _
    // Predicated region
    $region10: #{tpu_custom_call.1} parent=1 // pred_check
      _
    $region11: #{tpu_custom_call.1} parent=1 // pred_check_branch
      %38 = sbr.rel (0) target = $region13
    $region12: #{tpu_custom_call.1} parent=1 // pred_region
      _
    $region13: #{tpu_custom_call.1} parent=1 // pred_fallthru
      _
    // Predicated region
    $region14: #{tpu_custom_call.1} parent=1 // pred_check
      _
    $region15: #{tpu_custom_call.1} parent=1 // pred_check_branch
      %40 = sbr.rel (0) target = $region17
    $region16: #{tpu_custom_call.1} parent=1 // pred_region
      %s42 = ssub.s32 512, 512
      %43 = vsyncadd [#allocation6], %s42
      %s44 = sshll.u32 [#allocation7], 4
      %s45 = int_to_ptr.vmem [resolvable:$true] %s44
      %50 = dma.hbm_to_vmem [thread:$0]  %s3, 512, %s45, [#allocation6], 128, 128, 8
    $region17: #{tpu_custom_call.1} parent=1 // pred_fallthru
      _
    // Predicated region
    $region18: #{tpu_custom_call.1} parent=1 // pred_check
      _
    $region19: #{tpu_custom_call.1} parent=1 // pred_check_branch
      %52 = sbr.rel (0) target = $region21
    $region20: #{tpu_custom_call.1} parent=1 // pred_region
      _
    $region21: #{tpu_custom_call.1} parent=1 // pred_fallthru
      _
    // Predicated region
    $region22: #{tpu_custom_call.1} parent=1 // pred_check
      _
    $region23: #{tpu_custom_call.1} parent=1 // pred_check_branch
      %54 = sbr.rel (0) target = $region25
    $region24: #{tpu_custom_call.1} parent=1 // pred_region
      %55 = dma.done [#allocation3], 256
    $region25: #{tpu_custom_call.1} parent=1 // pred_fallthru
      _
    // Predicated region
    $region26: #{tpu_custom_call.1} parent=1 // pred_check
      _
    $region27: #{tpu_custom_call.1} parent=1 // pred_check_branch
      %57 = sbr.rel (0) target = $region29
    $region28: #{tpu_custom_call.1} parent=1 // pred_region
      %58 = dma.done [#allocation6], 512
    $region29: #{tpu_custom_call.1} parent=1 // pred_fallthru
      _
    // Predicated region
    $region30: #{tpu_custom_call.1} parent=1 // pred_check
      _
    $region31: #{tpu_custom_call.1} parent=1 // pred_check_branch
      %60 = sbr.rel (0) target = $region33
    $region32: #{tpu_custom_call.1} parent=1 // pred_region
      %61 = dma.done [#allocation6], 512
    $region33: #{tpu_custom_call.1} parent=1 // pred_fallthru
      _
    %v62 = vld [vmem:[#allocation2] sm:$0xff]
    %v63 = vld [vmem:[#allocation2 + $0x8] sm:$0xff]
    %v64 = vld [vmem:[#allocation5] sm:$0xff]
    %v65 = vld [vmem:[#allocation5 + $0x8] sm:$0xff]
    %v66 = vld [vmem:[#allocation5 + $0x10] sm:$0xff]
    %v67 = vld [vmem:[#allocation5 + $0x18] sm:$0xff]
    %v68 = vld [vmem:[%s2] sm:$0x1]
    %v70 = vlaneseq
    %v71 = vshrl.u32 %v70, 7
    %v72 = vsub.s32 0, %v71
    %v73 = vrot.slane %v68, %v72
    %vm75 = vcmask 261120
    %v77 = vsel %vm75, %v62, 0
    %v80 = vsel %vm75, %v63, 0
    %82 = vmatprep.subr.mxu0 0.0
    %83 = vmatpush1.msra.mxu0 %v64
    %84 = vmatprep.subr.mxu0 0.0
    %85 = vmatpush1.msra.mxu0 %v65
    %86 = vmatprep.subr.mxu0 0.0
    %87 = vmatpush1.msra.mxu0 %v66
    %88 = vmatprep.subr.mxu0 0.0
    %89 = vmatpush1.msra.mxu0 %v67
    %90 = vmatprep.subr.mxu0 0.0
    %91 = vmatpush1.msra.mxu0 0.0
    %92 = vmatprep.subr.mxu0 0.0
    %93 = vmatpush1.msra.mxu0 0.0
    %94 = vmatprep.subr.mxu0 0.0
    %95 = vmatpush1.msra.mxu0 0.0
    %96 = vmatprep.subr.mxu0 0.0
    %97 = vmatpush1.msra.mxu0 0.0
    %98 = vmatprep.subr.mxu0 0.0
    %99 = vmatpush1.msra.mxu0 0.0
    %100 = vmatprep.subr.mxu0 0.0
    %101 = vmatpush1.msra.mxu0 0.0
    %102 = vmatprep.subr.mxu0 0.0
    %103 = vmatpush1.msra.mxu0 0.0
    %104 = vmatprep.subr.mxu0 0.0
    %105 = vmatpush1.msra.mxu0 0.0
    %106 = vmatprep.subr.mxu0 0.0
    %107 = vmatpush1.msra.mxu0 0.0
    %108 = vmatprep.subr.mxu0 0.0
    %109 = vmatpush1.msra.mxu0 0.0
    %110 = vmatprep.subr.mxu0 0.0
    %111 = vmatpush1.msra.mxu0 0.0
    %112 = vmatprep.subr.mxu0 0.0
    %113 = vmatpush1.msra.mxu0 0.0
    %114 = vmatprep.subr.mxu0 0.0
    %115 = vmatpush1.msra.mxu0 0.0
    %116 = vmatprep.subr.mxu0 0.0
    %117 = vmatpush1.msra.mxu0 0.0
    %118 = vmatprep.subr.mxu0 0.0
    %119 = vmatpush1.msra.mxu0 0.0
    %120 = vmatprep.subr.mxu0 0.0
    %121 = vmatpush1.msra.mxu0 0.0
    %122 = vmatprep.subr.mxu0 0.0
    %123 = vmatpush1.msra.mxu0 0.0
    %124 = vmatprep.subr.mxu0 0.0
    %125 = vmatpush1.msra.mxu0 0.0
    %126 = vmatprep.subr.mxu0 0.0
    %127 = vmatpush1.msra.mxu0 0.0
    %128 = vmatprep.subr.mxu0 0.0
    %129 = vmatpush1.msra.mxu0 0.0
    %130 = vmatprep.subr.mxu0 0.0
    %131 = vmatpush1.msra.mxu0 0.0
    %132 = vmatprep.subr.mxu0 0.0
    %133 = vmatpush1.msra.mxu0 0.0
    %134 = vmatprep.subr.mxu0 0.0
    %135 = vmatpush1.msra.mxu0 0.0
    %136 = vmatprep.subr.mxu0 0.0
    %137 = vmatpush1.msra.mxu0 0.0
    %138 = vmatprep.subr.mxu0 0.0
    %139 = vmatpush1.msra.mxu0 0.0
    %140 = vmatprep.subr.mxu0 0.0
    %141 = vmatpush1.msra.mxu0 0.0
    %142 = vmatprep.subr.mxu0 0.0
    %143 = vmatpush1.msra.mxu0 0.0
    %144 = vmatprep.subr.mxu0 0.0
    %145 = vmatpush1.msra.mxu0 0.0
    %146 = vmatprep.mubr.f32.mxu0 0.0
    %147 = vmatmul.mubr.f32.gmra.mrb[0].mxu0 %v77
    %v148 = vpop.f32.mrb[0].mxu0
    %v149 = vadd.f32 %v73, %v148
    %v150 = vpop.f32.mrb[0].mxu0
    %151 = vmatprep.mubr.f32.mxu0 0.0
    %152 = vmatmul.mubr.f32.gmra.mrb[0].mxu0 %v80
    %v153 = vpop.f32.mrb[0].mxu0
    %v154 = vadd.f32 %v73, %v153
    %v155 = vpop.f32.mrb[0].mxu0
    %156 = vdwg.mxu0
    %v157 = vlaneseq
    %v158 = vshrl.u32 %v157, 7
    %v159 = vlaneseq
    %v160 = vand.u32 %v159, 127
    %vm161 = vcmp.le.s32.totalorder %v160, %v158
    %v162 = vsel %vm161, 0.0, -3.4028235e+38
    %164 = vrot.lane.b32.xlu0 %v149, 96
    %v165 = vpop.permute.xlu0 %164
    %vm166 = vcmask 64512
    %v167 = vsel %vm166, %v149, 0
    %v169 = vsel %vm166, %v165, 0
    %171 = vmatprep.subr.mxu0 0.0
    %172 = vmatpush1.xpose.msra.mxu0 %v169
    %173 = vmatprep.subr.mxu0 0.0
    %174 = vmatpush1.xpose.msra.mxu0 0.0
    %175 = vmatprep.subr.mxu0 0.0
    %176 = vmatpush1.xpose.msra.mxu0 0.0
    %177 = vmatprep.subr.mxu0 0.0
    %178 = vmatpush1.xpose.msra.mxu0 0.0
    %179 = vmatprep.subr.mxu0 0.0
    %180 = vmatpush1.xpose.msra.mxu0 0.0
    %181 = vmatprep.subr.mxu0 0.0
    %182 = vmatpush1.xpose.msra.mxu0 0.0
    %183 = vmatprep.subr.mxu0 0.0
    %184 = vmatpush1.xpose.msra.mxu0 0.0
    %185 = vmatprep.subr.mxu0 0.0
    %186 = vmatpush1.xpose.msra.mxu0 0.0
    %187 = vmatprep.subr.mxu0 0.0
    %188 = vmatpush1.xpose.msra.mxu0 0.0
    %189 = vmatprep.subr.mxu0 0.0
    %190 = vmatpush1.xpose.msra.mxu0 0.0
    %191 = vmatprep.subr.mxu0 0.0
    %192 = vmatpush1.xpose.msra.mxu0 0.0
    %193 = vmatprep.subr.mxu0 0.0
    %194 = vmatpush1.xpose.msra.mxu0 0.0
    %195 = vmatprep.subr.mxu0 0.0
    %196 = vmatpush1.xpose.msra.mxu0 0.0
    %197 = vmatprep.subr.mxu0 0.0
    %198 = vmatpush1.xpose.msra.mxu0 0.0
    %199 = vmatprep.subr.mxu0 0.0
    %200 = vmatpush1.xpose.msra.mxu0 0.0
    %201 = vmatprep.subr.mxu0 0.0
    %202 = vmatpush1.xpose.msra.mxu0 0.0
    %203 = vmatprep.subr.mxu0 0.0
    %204 = vmatpush1.xpose.msra.mxu0 0.0
    %205 = vmatprep.subr.mxu0 0.0
    %206 = vmatpush1.xpose.msra.mxu0 0.0
    %207 = vmatprep.subr.mxu0 0.0
    %208 = vmatpush1.xpose.msra.mxu0 0.0
    %209 = vmatprep.subr.mxu0 0.0
    %210 = vmatpush1.xpose.msra.mxu0 0.0
    %211 = vmatprep.subr.mxu0 0.0
    %212 = vmatpush1.xpose.msra.mxu0 0.0
    %213 = vmatprep.subr.mxu0 0.0
    %214 = vmatpush1.xpose.msra.mxu0 0.0
    %215 = vmatprep.subr.mxu0 0.0
    %216 = vmatpush1.xpose.msra.mxu0 0.0
    %217 = vmatprep.subr.mxu0 0.0
    %218 = vmatpush1.xpose.msra.mxu0 0.0
    %219 = vmatprep.subr.mxu0 0.0
    %220 = vmatpush1.xpose.msra.mxu0 0.0
    %221 = vmatprep.subr.mxu0 0.0
    %222 = vmatpush1.xpose.msra.mxu0 0.0
    %223 = vmatprep.subr.mxu0 0.0
    %224 = vmatpush1.xpose.msra.mxu0 0.0
    %225 = vmatprep.subr.mxu0 0.0
    %226 = vmatpush1.xpose.msra.mxu0 0.0
    %227 = vmatprep.subr.mxu0 0.0
    %228 = vmatpush1.xpose.msra.mxu0 0.0
    %229 = vmatprep.subr.mxu0 0.0
    %230 = vmatpush1.xpose.msra.mxu0 0.0
    %231 = vmatprep.subr.mxu0 0.0
    %232 = vmatpush1.xpose.msra.mxu0 0.0
    %233 = vmatprep.subr.mxu0 0.0
    %234 = vmatpush1.xpose.msra.mxu0 0.0
    %235 = vmatprep.mubr.f32.mxu0 0.0
    %236 = vmatmul.mubr.f32.gmra.mrb[0].mxu0 %v167
    %v237 = vpop.f32.mrb[0].mxu0
    %v238 = vadd.f32 0.0, %v237
    %v239 = vpop.f32.mrb[0].mxu0
    %240 = vdwg.mxu0
    %242 = vrot.lane.b32.xlu0 %v154, 96
    %v243 = vpop.permute.xlu0 %242
    %v244 = vsel %vm166, %v154, 0
    %v246 = vsel %vm166, %v243, 0
    %248 = vmatprep.subr.mxu0 0.0
    %249 = vmatpush1.xpose.msra.mxu0 %v246
    %250 = vmatprep.subr.mxu0 0.0
    %251 = vmatpush1.xpose.msra.mxu0 0.0
    %252 = vmatprep.subr.mxu0 0.0
    %253 = vmatpush1.xpose.msra.mxu0 0.0
    %254 = vmatprep.subr.mxu0 0.0
    %255 = vmatpush1.xpose.msra.mxu0 0.0
    %256 = vmatprep.subr.mxu0 0.0
    %257 = vmatpush1.xpose.msra.mxu0 0.0
    %258 = vmatprep.subr.mxu0 0.0
    %259 = vmatpush1.xpose.msra.mxu0 0.0
    %260 = vmatprep.subr.mxu0 0.0
    %261 = vmatpush1.xpose.msra.mxu0 0.0
    %262 = vmatprep.subr.mxu0 0.0
    %263 = vmatpush1.xpose.msra.mxu0 0.0
    %264 = vmatprep.subr.mxu0 0.0
    %265 = vmatpush1.xpose.msra.mxu0 0.0
    %266 = vmatprep.subr.mxu0 0.0
    %267 = vmatpush1.xpose.msra.mxu0 0.0
    %268 = vmatprep.subr.mxu0 0.0
    %269 = vmatpush1.xpose.msra.mxu0 0.0
    %270 = vmatprep.subr.mxu0 0.0
    %271 = vmatpush1.xpose.msra.mxu0 0.0
    %272 = vmatprep.subr.mxu0 0.0
    %273 = vmatpush1.xpose.msra.mxu0 0.0
    %274 = vmatprep.subr.mxu0 0.0
    %275 = vmatpush1.xpose.msra.mxu0 0.0
    %276 = vmatprep.subr.mxu0 0.0
    %277 = vmatpush1.xpose.msra.mxu0 0.0
    %278 = vmatprep.subr.mxu0 0.0
    %279 = vmatpush1.xpose.msra.mxu0 0.0
    %280 = vmatprep.subr.mxu0 0.0
    %281 = vmatpush1.xpose.msra.mxu0 0.0
    %282 = vmatprep.subr.mxu0 0.0
    %283 = vmatpush1.xpose.msra.mxu0 0.0
    %284 = vmatprep.subr.mxu0 0.0
    %285 = vmatpush1.xpose.msra.mxu0 0.0
    %286 = vmatprep.subr.mxu0 0.0
    %287 = vmatpush1.xpose.msra.mxu0 0.0
    %288 = vmatprep.subr.mxu0 0.0
    %289 = vmatpush1.xpose.msra.mxu0 0.0
    %290 = vmatprep.subr.mxu0 0.0
    %291 = vmatpush1.xpose.msra.mxu0 0.0
    %292 = vmatprep.subr.mxu0 0.0
    %293 = vmatpush1.xpose.msra.mxu0 0.0
    %294 = vmatprep.subr.mxu0 0.0
    %295 = vmatpush1.xpose.msra.mxu0 0.0
    %296 = vmatprep.subr.mxu0 0.0
    %297 = vmatpush1.xpose.msra.mxu0 0.0
    %298 = vmatprep.subr.mxu0 0.0
    %299 = vmatpush1.xpose.msra.mxu0 0.0
    %300 = vmatprep.subr.mxu0 0.0
    %301 = vmatpush1.xpose.msra.mxu0 0.0
    %302 = vmatprep.subr.mxu0 0.0
    %303 = vmatpush1.xpose.msra.mxu0 0.0
    %304 = vmatprep.subr.mxu0 0.0
    %305 = vmatpush1.xpose.msra.mxu0 0.0
    %306 = vmatprep.subr.mxu0 0.0
    %307 = vmatpush1.xpose.msra.mxu0 0.0
    %308 = vmatprep.subr.mxu0 0.0
    %309 = vmatpush1.xpose.msra.mxu0 0.0
    %310 = vmatprep.subr.mxu0 0.0
    %311 = vmatpush1.xpose.msra.mxu0 0.0
    %312 = vmatprep.mubr.f32.mxu0 0.0
    %313 = vmatmul.mubr.f32.gmra.mrb[0].mxu0 %v244
    %v314 = vpop.f32.mrb[0].mxu0
    %v315 = vadd.f32 0.0, %v314
    %v316 = vpop.f32.mrb[0].mxu0
    %317 = vdwg.mxu0
    %v318 = vmul.f32 %v238, 0.35355338
    %v319 = vmul.f32 %v315, 0.35355338
    %v320 = vadd.f32 %v318, %v162
    %v321 = vadd.f32 %v319, %v162
    %v322 = vsel %vm166, %v320, -inf
    %323 = vmax.xlane.f32.xlu0 %v322
    %v324 = vpop.xlane.xlu0 %323
    %v325 = vsel %vm166, %v321, -inf
    %326 = vmax.xlane.f32.xlu0 %v325
    %v327 = vpop.xlane.xlu0 %326
    %v328 = vsub.f32 %v320, %v324
    %v329 = vsub.f32 %v321, %v327
    %v330 = vmul.f32 %v328, 1.442695
    %v331 = vpow.pop %v330
    %v332 = vmul.f32 %v329, 1.442695
    %v333 = vpow.pop %v332
    %v334 = vsel %vm166, %v331, 0.0
    %335 = vadd.xlane.f32.xlu0 %v334
    %v336 = vpop.xlane.xlu0 %335
    %v337 = vsel %vm166, %v333, 0.0
    %338 = vadd.xlane.f32.xlu0 %v337
    %v339 = vpop.xlane.xlu0 %338
    %v340 = vrcp.pop %v336
    %v341 = vmul.f32 %v331, %v340
    %v342 = vrcp.pop %v339
    %v343 = vmul.f32 %v333, %v342
    %344 = vrot.lane.b32.xlu0 %v149, 64
    %v345 = vpop.permute.xlu0 %344
    %v348 = vsel %vm166, %v341, 0
    %350 = vmatprep.subr.mxu0 0.0
    %351 = vmatpush1.msra.mxu0 %v345
    %352 = vmatprep.subr.mxu0 0.0
    %353 = vmatpush1.msra.mxu0 0.0
    %354 = vmatprep.subr.mxu0 0.0
    %355 = vmatpush1.msra.mxu0 0.0
    %356 = vmatprep.subr.mxu0 0.0
    %357 = vmatpush1.msra.mxu0 0.0
    %358 = vmatprep.subr.mxu0 0.0
    %359 = vmatpush1.msra.mxu0 0.0
    %360 = vmatprep.subr.mxu0 0.0
    %361 = vmatpush1.msra.mxu0 0.0
    %362 = vmatprep.subr.mxu0 0.0
    %363 = vmatpush1.msra.mxu0 0.0
    %364 = vmatprep.subr.mxu0 0.0
    %365 = vmatpush1.msra.mxu0 0.0
    %366 = vmatprep.subr.mxu0 0.0
    %367 = vmatpush1.msra.mxu0 0.0
    %368 = vmatprep.subr.mxu0 0.0
    %369 = vmatpush1.msra.mxu0 0.0
    %370 = vmatprep.subr.mxu0 0.0
    %371 = vmatpush1.msra.mxu0 0.0
    %372 = vmatprep.subr.mxu0 0.0
    %373 = vmatpush1.msra.mxu0 0.0
    %374 = vmatprep.subr.mxu0 0.0
    %375 = vmatpush1.msra.mxu0 0.0
    %376 = vmatprep.subr.mxu0 0.0
    %377 = vmatpush1.msra.mxu0 0.0
    %378 = vmatprep.subr.mxu0 0.0
    %379 = vmatpush1.msra.mxu0 0.0
    %380 = vmatprep.subr.mxu0 0.0
    %381 = vmatpush1.msra.mxu0 0.0
    %382 = vmatprep.subr.mxu0 0.0
    %383 = vmatpush1.msra.mxu0 0.0
    %384 = vmatprep.subr.mxu0 0.0
    %385 = vmatpush1.msra.mxu0 0.0
    %386 = vmatprep.subr.mxu0 0.0
    %387 = vmatpush1.msra.mxu0 0.0
    %388 = vmatprep.subr.mxu0 0.0
    %389 = vmatpush1.msra.mxu0 0.0
    %390 = vmatprep.subr.mxu0 0.0
    %391 = vmatpush1.msra.mxu0 0.0
    %392 = vmatprep.subr.mxu0 0.0
    %393 = vmatpush1.msra.mxu0 0.0
    %394 = vmatprep.subr.mxu0 0.0
    %395 = vmatpush1.msra.mxu0 0.0
    %396 = vmatprep.subr.mxu0 0.0
    %397 = vmatpush1.msra.mxu0 0.0
    %398 = vmatprep.subr.mxu0 0.0
    %399 = vmatpush1.msra.mxu0 0.0
    %400 = vmatprep.subr.mxu0 0.0
    %401 = vmatpush1.msra.mxu0 0.0
    %402 = vmatprep.subr.mxu0 0.0
    %403 = vmatpush1.msra.mxu0 0.0
    %404 = vmatprep.subr.mxu0 0.0
    %405 = vmatpush1.msra.mxu0 0.0
    %406 = vmatprep.subr.mxu0 0.0
    %407 = vmatpush1.msra.mxu0 0.0
    %408 = vmatprep.subr.mxu0 0.0
    %409 = vmatpush1.msra.mxu0 0.0
    %410 = vmatprep.subr.mxu0 0.0
    %411 = vmatpush1.msra.mxu0 0.0
    %412 = vmatprep.subr.mxu0 0.0
    %413 = vmatpush1.msra.mxu0 0.0
    %414 = vmatprep.mubr.f32.mxu0 0.0
    %415 = vmatmul.mubr.f32.gmra.mrb[0].mxu0 %v348
    %v416 = vpop.f32.mrb[0].mxu0
    %v417 = vadd.f32 0.0, %v416
    %v418 = vpop.f32.mrb[0].mxu0
    %419 = vdwg.mxu0
    %420 = vrot.lane.b32.xlu0 %v154, 64
    %v421 = vpop.permute.xlu0 %420
    %v424 = vsel %vm166, %v343, 0
    %426 = vmatprep.subr.mxu0 0.0
    %427 = vmatpush1.msra.mxu0 %v421
    %428 = vmatprep.subr.mxu0 0.0
    %429 = vmatpush1.msra.mxu0 0.0
    %430 = vmatprep.subr.mxu0 0.0
    %431 = vmatpush1.msra.mxu0 0.0
    %432 = vmatprep.subr.mxu0 0.0
    %433 = vmatpush1.msra.mxu0 0.0
    %434 = vmatprep.subr.mxu0 0.0
    %435 = vmatpush1.msra.mxu0 0.0
    %436 = vmatprep.subr.mxu0 0.0
    %437 = vmatpush1.msra.mxu0 0.0
    %438 = vmatprep.subr.mxu0 0.0
    %439 = vmatpush1.msra.mxu0 0.0
    %440 = vmatprep.subr.mxu0 0.0
    %441 = vmatpush1.msra.mxu0 0.0
    %442 = vmatprep.subr.mxu0 0.0
    %443 = vmatpush1.msra.mxu0 0.0
    %444 = vmatprep.subr.mxu0 0.0
    %445 = vmatpush1.msra.mxu0 0.0
    %446 = vmatprep.subr.mxu0 0.0
    %447 = vmatpush1.msra.mxu0 0.0
    %448 = vmatprep.subr.mxu0 0.0
    %449 = vmatpush1.msra.mxu0 0.0
    %450 = vmatprep.subr.mxu0 0.0
    %451 = vmatpush1.msra.mxu0 0.0
    %452 = vmatprep.subr.mxu0 0.0
    %453 = vmatpush1.msra.mxu0 0.0
    %454 = vmatprep.subr.mxu0 0.0
    %455 = vmatpush1.msra.mxu0 0.0
    %456 = vmatprep.subr.mxu0 0.0
    %457 = vmatpush1.msra.mxu0 0.0
    %458 = vmatprep.subr.mxu0 0.0
    %459 = vmatpush1.msra.mxu0 0.0
    %460 = vmatprep.subr.mxu0 0.0
    %461 = vmatpush1.msra.mxu0 0.0
    %462 = vmatprep.subr.mxu0 0.0
    %463 = vmatpush1.msra.mxu0 0.0
    %464 = vmatprep.subr.mxu0 0.0
    %465 = vmatpush1.msra.mxu0 0.0
    %466 = vmatprep.subr.mxu0 0.0
    %467 = vmatpush1.msra.mxu0 0.0
    %468 = vmatprep.subr.mxu0 0.0
    %469 = vmatpush1.msra.mxu0 0.0
    %470 = vmatprep.subr.mxu0 0.0
    %471 = vmatpush1.msra.mxu0 0.0
    %472 = vmatprep.subr.mxu0 0.0
    %473 = vmatpush1.msra.mxu0 0.0
    %474 = vmatprep.subr.mxu0 0.0
    %475 = vmatpush1.msra.mxu0 0.0
    %476 = vmatprep.subr.mxu0 0.0
    %477 = vmatpush1.msra.mxu0 0.0
    %478 = vmatprep.subr.mxu0 0.0
    %479 = vmatpush1.msra.mxu0 0.0
    %480 = vmatprep.subr.mxu0 0.0
    %481 = vmatpush1.msra.mxu0 0.0
    %482 = vmatprep.subr.mxu0 0.0
    %483 = vmatpush1.msra.mxu0 0.0
    %484 = vmatprep.subr.mxu0 0.0
    %485 = vmatpush1.msra.mxu0 0.0
    %486 = vmatprep.subr.mxu0 0.0
    %487 = vmatpush1.msra.mxu0 0.0
    %488 = vmatprep.subr.mxu0 0.0
    %489 = vmatpush1.msra.mxu0 0.0
    %490 = vmatprep.mubr.f32.mxu0 0.0
    %491 = vmatmul.mubr.f32.gmra.mrb[0].mxu0 %v424
    %v492 = vpop.f32.mrb[0].mxu0
    %v493 = vadd.f32 0.0, %v492
    %v494 = vpop.f32.mrb[0].mxu0
    %495 = vdwg.mxu0
    %v496 = vld [vmem:[#allocation7] sm:$0xff]
    %497 = vrot.lane.b32.xlu0 %v149, 120
    %v498 = vpop.permute.xlu0 %497
    %499 = vrot.lane.b32.xlu0 %v149, 88
    %v500 = vpop.permute.xlu0 %499
    %v501 = vsel %vm166, %v498, 0
    %v503 = vsel %vm166, %v500, 0
    %505 = vmatprep.subr.mxu0 0.0
    %506 = vmatpush1.xpose.msra.mxu0 %v503
    %507 = vmatprep.subr.mxu0 0.0
    %508 = vmatpush1.xpose.msra.mxu0 0.0
    %509 = vmatprep.subr.mxu0 0.0
    %510 = vmatpush1.xpose.msra.mxu0 0.0
    %511 = vmatprep.subr.mxu0 0.0
    %512 = vmatpush1.xpose.msra.mxu0 0.0
    %513 = vmatprep.subr.mxu0 0.0
    %514 = vmatpush1.xpose.msra.mxu0 0.0
    %515 = vmatprep.subr.mxu0 0.0
    %516 = vmatpush1.xpose.msra.mxu0 0.0
    %517 = vmatprep.subr.mxu0 0.0
    %518 = vmatpush1.xpose.msra.mxu0 0.0
    %519 = vmatprep.subr.mxu0 0.0
    %520 = vmatpush1.xpose.msra.mxu0 0.0
    %521 = vmatprep.subr.mxu0 0.0
    %522 = vmatpush1.xpose.msra.mxu0 0.0
    %523 = vmatprep.subr.mxu0 0.0
    %524 = vmatpush1.xpose.msra.mxu0 0.0
    %525 = vmatprep.subr.mxu0 0.0
    %526 = vmatpush1.xpose.msra.mxu0 0.0
    %527 = vmatprep.subr.mxu0 0.0
    %528 = vmatpush1.xpose.msra.mxu0 0.0
    %529 = vmatprep.subr.mxu0 0.0
    %530 = vmatpush1.xpose.msra.mxu0 0.0
    %531 = vmatprep.subr.mxu0 0.0
    %532 = vmatpush1.xpose.msra.mxu0 0.0
    %533 = vmatprep.subr.mxu0 0.0
    %534 = vmatpush1.xpose.msra.mxu0 0.0
    %535 = vmatprep.subr.mxu0 0.0
    %536 = vmatpush1.xpose.msra.mxu0 0.0
    %537 = vmatprep.subr.mxu0 0.0
    %538 = vmatpush1.xpose.msra.mxu0 0.0
    %539 = vmatprep.subr.mxu0 0.0
    %540 = vmatpush1.xpose.msra.mxu0 0.0
    %541 = vmatprep.subr.mxu0 0.0
    %542 = vmatpush1.xpose.msra.mxu0 0.0
    %543 = vmatprep.subr.mxu0 0.0
    %544 = vmatpush1.xpose.msra.mxu0 0.0
    %545 = vmatprep.subr.mxu0 0.0
    %546 = vmatpush1.xpose.msra.mxu0 0.0
    %547 = vmatprep.subr.mxu0 0.0
    %548 = vmatpush1.xpose.msra.mxu0 0.0
    %549 = vmatprep.subr.mxu0 0.0
    %550 = vmatpush1.xpose.msra.mxu0 0.0
    %551 = vmatprep.subr.mxu0 0.0
    %552 = vmatpush1.xpose.msra.mxu0 0.0
    %553 = vmatprep.subr.mxu0 0.0
    %554 = vmatpush1.xpose.msra.mxu0 0.0
    %555 = vmatprep.subr.mxu0 0.0
    %556 = vmatpush1.xpose.msra.mxu0 0.0
    %557 = vmatprep.subr.mxu0 0.0
    %558 = vmatpush1.xpose.msra.mxu0 0.0
    %559 = vmatprep.subr.mxu0 0.0
    %560 = vmatpush1.xpose.msra.mxu0 0.0
    %561 = vmatprep.subr.mxu0 0.0
    %562 = vmatpush1.xpose.msra.mxu0 0.0
    %563 = vmatprep.subr.mxu0 0.0
    %564 = vmatpush1.xpose.msra.mxu0 0.0
    %565 = vmatprep.subr.mxu0 0.0
    %566 = vmatpush1.xpose.msra.mxu0 0.0
    %567 = vmatprep.subr.mxu0 0.0
    %568 = vmatpush1.xpose.msra.mxu0 0.0
    %569 = vmatprep.mubr.f32.mxu0 0.0
    %570 = vmatmul.mubr.f32.gmra.mrb[0].mxu0 %v501
    %v571 = vpop.f32.mrb[0].mxu0
    %v572 = vadd.f32 0.0, %v571
    %v573 = vpop.f32.mrb[0].mxu0
    %574 = vdwg.mxu0
    %575 = vrot.lane.b32.xlu0 %v154, 120
    %v576 = vpop.permute.xlu0 %575
    %577 = vrot.lane.b32.xlu0 %v154, 88
    %v578 = vpop.permute.xlu0 %577
    %v579 = vsel %vm166, %v576, 0
    %v581 = vsel %vm166, %v578, 0
    %583 = vmatprep.subr.mxu0 0.0
    %584 = vmatpush1.xpose.msra.mxu0 %v581
    %585 = vmatprep.subr.mxu0 0.0
    %586 = vmatpush1.xpose.msra.mxu0 0.0
    %587 = vmatprep.subr.mxu0 0.0
    %588 = vmatpush1.xpose.msra.mxu0 0.0
    %589 = vmatprep.subr.mxu0 0.0
    %590 = vmatpush1.xpose.msra.mxu0 0.0
    %591 = vmatprep.subr.mxu0 0.0
    %592 = vmatpush1.xpose.msra.mxu0 0.0
    %593 = vmatprep.subr.mxu0 0.0
    %594 = vmatpush1.xpose.msra.mxu0 0.0
    %595 = vmatprep.subr.mxu0 0.0
    %596 = vmatpush1.xpose.msra.mxu0 0.0
    %597 = vmatprep.subr.mxu0 0.0
    %598 = vmatpush1.xpose.msra.mxu0 0.0
    %599 = vmatprep.subr.mxu0 0.0
    %600 = vmatpush1.xpose.msra.mxu0 0.0
    %601 = vmatprep.subr.mxu0 0.0
    %602 = vmatpush1.xpose.msra.mxu0 0.0
    %603 = vmatprep.subr.mxu0 0.0
    %604 = vmatpush1.xpose.msra.mxu0 0.0
    %605 = vmatprep.subr.mxu0 0.0
    %606 = vmatpush1.xpose.msra.mxu0 0.0
    %607 = vmatprep.subr.mxu0 0.0
    %608 = vmatpush1.xpose.msra.mxu0 0.0
    %609 = vmatprep.subr.mxu0 0.0
    %610 = vmatpush1.xpose.msra.mxu0 0.0
    %611 = vmatprep.subr.mxu0 0.0
    %612 = vmatpush1.xpose.msra.mxu0 0.0
    %613 = vmatprep.subr.mxu0 0.0
    %614 = vmatpush1.xpose.msra.mxu0 0.0
    %615 = vmatprep.subr.mxu0 0.0
    %616 = vmatpush1.xpose.msra.mxu0 0.0
    %617 = vmatprep.subr.mxu0 0.0
    %618 = vmatpush1.xpose.msra.mxu0 0.0
    %619 = vmatprep.subr.mxu0 0.0
    %620 = vmatpush1.xpose.msra.mxu0 0.0
    %621 = vmatprep.subr.mxu0 0.0
    %622 = vmatpush1.xpose.msra.mxu0 0.0
    %623 = vmatprep.subr.mxu0 0.0
    %624 = vmatpush1.xpose.msra.mxu0 0.0
    %625 = vmatprep.subr.mxu0 0.0
    %626 = vmatpush1.xpose.msra.mxu0 0.0
    %627 = vmatprep.subr.mxu0 0.0
    %628 = vmatpush1.xpose.msra.mxu0 0.0
    %629 = vmatprep.subr.mxu0 0.0
    %630 = vmatpush1.xpose.msra.mxu0 0.0
    %631 = vmatprep.subr.mxu0 0.0
    %632 = vmatpush1.xpose.msra.mxu0 0.0
    %633 = vmatprep.subr.mxu0 0.0
    %634 = vmatpush1.xpose.msra.mxu0 0.0
    %635 = vmatprep.subr.mxu0 0.0
    %636 = vmatpush1.xpose.msra.mxu0 0.0
    %637 = vmatprep.subr.mxu0 0.0
    %638 = vmatpush1.xpose.msra.mxu0 0.0
    %639 = vmatprep.subr.mxu0 0.0
    %640 = vmatpush1.xpose.msra.mxu0 0.0
    %641 = vmatprep.subr.mxu0 0.0
    %642 = vmatpush1.xpose.msra.mxu0 0.0
    %643 = vmatprep.subr.mxu0 0.0
    %644 = vmatpush1.xpose.msra.mxu0 0.0
    %645 = vmatprep.subr.mxu0 0.0
    %646 = vmatpush1.xpose.msra.mxu0 0.0
    %647 = vmatprep.mubr.f32.mxu0 0.0
    %648 = vmatmul.mubr.f32.gmra.mrb[0].mxu0 %v579
    %v649 = vpop.f32.mrb[0].mxu0
    %v650 = vadd.f32 0.0, %v649
    %v651 = vpop.f32.mrb[0].mxu0
    %652 = vdwg.mxu0
    %v653 = vmul.f32 %v572, 0.35355338
    %v654 = vmul.f32 %v650, 0.35355338
    %v655 = vadd.f32 %v653, %v162
    %v656 = vadd.f32 %v654, %v162
    %v657 = vsel %vm166, %v655, -inf
    %658 = vmax.xlane.f32.xlu0 %v657
    %v659 = vpop.xlane.xlu0 %658
    %v660 = vsel %vm166, %v656, -inf
    %661 = vmax.xlane.f32.xlu0 %v660
    %v662 = vpop.xlane.xlu0 %661
    %v663 = vsub.f32 %v655, %v659
    %v664 = vsub.f32 %v656, %v662
    %v665 = vmul.f32 %v663, 1.442695
    %v666 = vpow.pop %v665
    %v667 = vmul.f32 %v664, 1.442695
    %v668 = vpow.pop %v667
    %v669 = vsel %vm166, %v666, 0.0
    %670 = vadd.xlane.f32.xlu0 %v669
    %v671 = vpop.xlane.xlu0 %670
    %v672 = vsel %vm166, %v668, 0.0
    %673 = vadd.xlane.f32.xlu0 %v672
    %v674 = vpop.xlane.xlu0 %673
    %v675 = vrcp.pop %v671
    %v676 = vmul.f32 %v666, %v675
    %v677 = vrcp.pop %v674
    %v678 = vmul.f32 %v668, %v677
    %679 = vrot.lane.b32.xlu0 %v149, 56
    %v680 = vpop.permute.xlu0 %679
    %v683 = vsel %vm166, %v676, 0
    %685 = vmatprep.subr.mxu0 0.0
    %686 = vmatpush1.msra.mxu0 %v680
    %687 = vmatprep.subr.mxu0 0.0
    %688 = vmatpush1.msra.mxu0 0.0
    %689 = vmatprep.subr.mxu0 0.0
    %690 = vmatpush1.msra.mxu0 0.0
    %691 = vmatprep.subr.mxu0 0.0
    %692 = vmatpush1.msra.mxu0 0.0
    %693 = vmatprep.subr.mxu0 0.0
    %694 = vmatpush1.msra.mxu0 0.0
    %695 = vmatprep.subr.mxu0 0.0
    %696 = vmatpush1.msra.mxu0 0.0
    %697 = vmatprep.subr.mxu0 0.0
    %698 = vmatpush1.msra.mxu0 0.0
    %699 = vmatprep.subr.mxu0 0.0
    %700 = vmatpush1.msra.mxu0 0.0
    %701 = vmatprep.subr.mxu0 0.0
    %702 = vmatpush1.msra.mxu0 0.0
    %703 = vmatprep.subr.mxu0 0.0
    %704 = vmatpush1.msra.mxu0 0.0
    %705 = vmatprep.subr.mxu0 0.0
    %706 = vmatpush1.msra.mxu0 0.0
    %707 = vmatprep.subr.mxu0 0.0
    %708 = vmatpush1.msra.mxu0 0.0
    %709 = vmatprep.subr.mxu0 0.0
    %710 = vmatpush1.msra.mxu0 0.0
    %711 = vmatprep.subr.mxu0 0.0
    %712 = vmatpush1.msra.mxu0 0.0
    %713 = vmatprep.subr.mxu0 0.0
    %714 = vmatpush1.msra.mxu0 0.0
    %715 = vmatprep.subr.mxu0 0.0
    %716 = vmatpush1.msra.mxu0 0.0
    %717 = vmatprep.subr.mxu0 0.0
    %718 = vmatpush1.msra.mxu0 0.0
    %719 = vmatprep.subr.mxu0 0.0
    %720 = vmatpush1.msra.mxu0 0.0
    %721 = vmatprep.subr.mxu0 0.0
    %722 = vmatpush1.msra.mxu0 0.0
    %723 = vmatprep.subr.mxu0 0.0
    %724 = vmatpush1.msra.mxu0 0.0
    %725 = vmatprep.subr.mxu0 0.0
    %726 = vmatpush1.msra.mxu0 0.0
    %727 = vmatprep.subr.mxu0 0.0
    %728 = vmatpush1.msra.mxu0 0.0
    %729 = vmatprep.subr.mxu0 0.0
    %730 = vmatpush1.msra.mxu0 0.0
    %731 = vmatprep.subr.mxu0 0.0
    %732 = vmatpush1.msra.mxu0 0.0
    %733 = vmatprep.subr.mxu0 0.0
    %734 = vmatpush1.msra.mxu0 0.0
    %735 = vmatprep.subr.mxu0 0.0
    %736 = vmatpush1.msra.mxu0 0.0
    %737 = vmatprep.subr.mxu0 0.0
    %738 = vmatpush1.msra.mxu0 0.0
    %739 = vmatprep.subr.mxu0 0.0
    %740 = vmatpush1.msra.mxu0 0.0
    %741 = vmatprep.subr.mxu0 0.0
    %742 = vmatpush1.msra.mxu0 0.0
    %743 = vmatprep.subr.mxu0 0.0
    %744 = vmatpush1.msra.mxu0 0.0
    %745 = vmatprep.subr.mxu0 0.0
    %746 = vmatpush1.msra.mxu0 0.0
    %747 = vmatprep.subr.mxu0 0.0
    %748 = vmatpush1.msra.mxu0 0.0
    %749 = vmatprep.mubr.f32.mxu0 0.0
    %750 = vmatmul.mubr.f32.gmra.mrb[0].mxu0 %v683
    %v751 = vpop.f32.mrb[0].mxu0
    %v752 = vadd.f32 0.0, %v751
    %v753 = vpop.f32.mrb[0].mxu0
    %754 = vdwg.mxu0
    %755 = vrot.lane.b32.xlu0 %v154, 56
    %v756 = vpop.permute.xlu0 %755
    %v759 = vsel %vm166, %v678, 0
    %761 = vmatprep.subr.mxu0 0.0
    %762 = vmatpush1.msra.mxu0 %v756
    %763 = vmatprep.subr.mxu0 0.0
    %764 = vmatpush1.msra.mxu0 0.0
    %765 = vmatprep.subr.mxu0 0.0
    %766 = vmatpush1.msra.mxu0 0.0
    %767 = vmatprep.subr.mxu0 0.0
    %768 = vmatpush1.msra.mxu0 0.0
    %769 = vmatprep.subr.mxu0 0.0
    %770 = vmatpush1.msra.mxu0 0.0
    %771 = vmatprep.subr.mxu0 0.0
    %772 = vmatpush1.msra.mxu0 0.0
    %773 = vmatprep.subr.mxu0 0.0
    %774 = vmatpush1.msra.mxu0 0.0
    %775 = vmatprep.subr.mxu0 0.0
    %776 = vmatpush1.msra.mxu0 0.0
    %777 = vmatprep.subr.mxu0 0.0
    %778 = vmatpush1.msra.mxu0 0.0
    %779 = vmatprep.subr.mxu0 0.0
    %780 = vmatpush1.msra.mxu0 0.0
    %781 = vmatprep.subr.mxu0 0.0
    %782 = vmatpush1.msra.mxu0 0.0
    %783 = vmatprep.subr.mxu0 0.0
    %784 = vmatpush1.msra.mxu0 0.0
    %785 = vmatprep.subr.mxu0 0.0
    %786 = vmatpush1.msra.mxu0 0.0
    %787 = vmatprep.subr.mxu0 0.0
    %788 = vmatpush1.msra.mxu0 0.0
    %789 = vmatprep.subr.mxu0 0.0
    %790 = vmatpush1.msra.mxu0 0.0
    %791 = vmatprep.subr.mxu0 0.0
    %792 = vmatpush1.msra.mxu0 0.0
    %793 = vmatprep.subr.mxu0 0.0
    %794 = vmatpush1.msra.mxu0 0.0
    %795 = vmatprep.subr.mxu0 0.0
    %796 = vmatpush1.msra.mxu0 0.0
    %797 = vmatprep.subr.mxu0 0.0
    %798 = vmatpush1.msra.mxu0 0.0
    %799 = vmatprep.subr.mxu0 0.0
    %800 = vmatpush1.msra.mxu0 0.0
    %801 = vmatprep.subr.mxu0 0.0
    %802 = vmatpush1.msra.mxu0 0.0
    %803 = vmatprep.subr.mxu0 0.0
    %804 = vmatpush1.msra.mxu0 0.0
    %805 = vmatprep.subr.mxu0 0.0
    %806 = vmatpush1.msra.mxu0 0.0
    %807 = vmatprep.subr.mxu0 0.0
    %808 = vmatpush1.msra.mxu0 0.0
    %809 = vmatprep.subr.mxu0 0.0
    %810 = vmatpush1.msra.mxu0 0.0
    %811 = vmatprep.subr.mxu0 0.0
    %812 = vmatpush1.msra.mxu0 0.0
    %813 = vmatprep.subr.mxu0 0.0
    %814 = vmatpush1.msra.mxu0 0.0
    %815 = vmatprep.subr.mxu0 0.0
    %816 = vmatpush1.msra.mxu0 0.0
    %817 = vmatprep.subr.mxu0 0.0
    %818 = vmatpush1.msra.mxu0 0.0
    %819 = vmatprep.subr.mxu0 0.0
    %820 = vmatpush1.msra.mxu0 0.0
    %821 = vmatprep.subr.mxu0 0.0
    %822 = vmatpush1.msra.mxu0 0.0
    %823 = vmatprep.subr.mxu0 0.0
    %824 = vmatpush1.msra.mxu0 0.0
    %825 = vmatprep.mubr.f32.mxu0 0.0
    %826 = vmatmul.mubr.f32.gmra.mrb[0].mxu0 %v759
    %v827 = vpop.f32.mrb[0].mxu0
    %v828 = vadd.f32 0.0, %v827
    %v829 = vpop.f32.mrb[0].mxu0
    %830 = vdwg.mxu0
    %v831 = vld [vmem:[#allocation7 + $0x8] sm:$0xff]
    %v833 = vsel %vm166, %v752, 0
    %v836 = vsel %vm166, %v828, 0
    %838 = vmatprep.subr.mxu0 0.0
    %839 = vmatpush1.msra.mxu0 %v831
    %840 = vmatprep.subr.mxu0 0.0
    %841 = vmatpush1.msra.mxu0 0.0
    %842 = vmatprep.subr.mxu0 0.0
    %843 = vmatpush1.msra.mxu0 0.0
    %844 = vmatprep.subr.mxu0 0.0
    %845 = vmatpush1.msra.mxu0 0.0
    %846 = vmatprep.subr.mxu0 0.0
    %847 = vmatpush1.msra.mxu0 0.0
    %848 = vmatprep.subr.mxu0 0.0
    %849 = vmatpush1.msra.mxu0 0.0
    %850 = vmatprep.subr.mxu0 0.0
    %851 = vmatpush1.msra.mxu0 0.0
    %852 = vmatprep.subr.mxu0 0.0
    %853 = vmatpush1.msra.mxu0 0.0
    %854 = vmatprep.subr.mxu0 0.0
    %855 = vmatpush1.msra.mxu0 0.0
    %856 = vmatprep.subr.mxu0 0.0
    %857 = vmatpush1.msra.mxu0 0.0
    %858 = vmatprep.subr.mxu0 0.0
    %859 = vmatpush1.msra.mxu0 0.0
    %860 = vmatprep.subr.mxu0 0.0
    %861 = vmatpush1.msra.mxu0 0.0
    %862 = vmatprep.subr.mxu0 0.0
    %863 = vmatpush1.msra.mxu0 0.0
    %864 = vmatprep.subr.mxu0 0.0
    %865 = vmatpush1.msra.mxu0 0.0
    %866 = vmatprep.subr.mxu0 0.0
    %867 = vmatpush1.msra.mxu0 0.0
    %868 = vmatprep.subr.mxu0 0.0
    %869 = vmatpush1.msra.mxu0 0.0
    %870 = vmatprep.subr.mxu0 0.0
    %871 = vmatpush1.msra.mxu0 0.0
    %872 = vmatprep.subr.mxu0 0.0
    %873 = vmatpush1.msra.mxu0 0.0
    %874 = vmatprep.subr.mxu0 0.0
    %875 = vmatpush1.msra.mxu0 0.0
    %876 = vmatprep.subr.mxu0 0.0
    %877 = vmatpush1.msra.mxu0 0.0
    %878 = vmatprep.subr.mxu0 0.0
    %879 = vmatpush1.msra.mxu0 0.0
    %880 = vmatprep.subr.mxu0 0.0
    %881 = vmatpush1.msra.mxu0 0.0
    %882 = vmatprep.subr.mxu0 0.0
    %883 = vmatpush1.msra.mxu0 0.0
    %884 = vmatprep.subr.mxu0 0.0
    %885 = vmatpush1.msra.mxu0 0.0
    %886 = vmatprep.subr.mxu0 0.0
    %887 = vmatpush1.msra.mxu0 0.0
    %888 = vmatprep.subr.mxu0 0.0
    %889 = vmatpush1.msra.mxu0 0.0
    %890 = vmatprep.subr.mxu0 0.0
    %891 = vmatpush1.msra.mxu0 0.0
    %892 = vmatprep.subr.mxu0 0.0
    %893 = vmatpush1.msra.mxu0 0.0
    %894 = vmatprep.subr.mxu0 0.0
    %895 = vmatpush1.msra.mxu0 0.0
    %896 = vmatprep.subr.mxu0 0.0
    %897 = vmatpush1.msra.mxu0 0.0
    %898 = vmatprep.subr.mxu0 0.0
    %899 = vmatpush1.msra.mxu0 0.0
    %900 = vmatprep.subr.mxu0 0.0
    %901 = vmatpush1.msra.mxu0 0.0
    %902 = vmatprep.mubr.f32.mxu0 0.0
    %903 = vmatmul.mubr.f32.gmra.mrb[0].mxu0 %v833
    %v904 = vpop.f32.mrb[0].mxu0
    %v905 = vadd.f32 0.0, %v904
    %v906 = vpop.f32.mrb[0].mxu0
    %907 = vmatprep.mubr.f32.mxu0 0.0
    %908 = vmatmul.mubr.f32.gmra.mrb[0].mxu0 %v836
    %v909 = vpop.f32.mrb[0].mxu0
    %v910 = vadd.f32 0.0, %v909
    %v911 = vpop.f32.mrb[0].mxu0
    %912 = vdwg.mxu0
    %v914 = vsel %vm166, %v417, 0
    %v917 = vsel %vm166, %v493, 0
    %919 = vmatprep.subr.mxu0 0.0
    %920 = vmatpush1.msra.mxu0 %v496
    %921 = vmatprep.subr.mxu0 0.0
    %922 = vmatpush1.msra.mxu0 0.0
    %923 = vmatprep.subr.mxu0 0.0
    %924 = vmatpush1.msra.mxu0 0.0
    %925 = vmatprep.subr.mxu0 0.0
    %926 = vmatpush1.msra.mxu0 0.0
    %927 = vmatprep.subr.mxu0 0.0
    %928 = vmatpush1.msra.mxu0 0.0
    %929 = vmatprep.subr.mxu0 0.0
    %930 = vmatpush1.msra.mxu0 0.0
    %931 = vmatprep.subr.mxu0 0.0
    %932 = vmatpush1.msra.mxu0 0.0
    %933 = vmatprep.subr.mxu0 0.0
    %934 = vmatpush1.msra.mxu0 0.0
    %935 = vmatprep.subr.mxu0 0.0
    %936 = vmatpush1.msra.mxu0 0.0
    %937 = vmatprep.subr.mxu0 0.0
    %938 = vmatpush1.msra.mxu0 0.0
    %939 = vmatprep.subr.mxu0 0.0
    %940 = vmatpush1.msra.mxu0 0.0
    %941 = vmatprep.subr.mxu0 0.0
    %942 = vmatpush1.msra.mxu0 0.0
    %943 = vmatprep.subr.mxu0 0.0
    %944 = vmatpush1.msra.mxu0 0.0
    %945 = vmatprep.subr.mxu0 0.0
    %946 = vmatpush1.msra.mxu0 0.0
    %947 = vmatprep.subr.mxu0 0.0
    %948 = vmatpush1.msra.mxu0 0.0
    %949 = vmatprep.subr.mxu0 0.0
    %950 = vmatpush1.msra.mxu0 0.0
    %951 = vmatprep.subr.mxu0 0.0
    %952 = vmatpush1.msra.mxu0 0.0
    %953 = vmatprep.subr.mxu0 0.0
    %954 = vmatpush1.msra.mxu0 0.0
    %955 = vmatprep.subr.mxu0 0.0
    %956 = vmatpush1.msra.mxu0 0.0
    %957 = vmatprep.subr.mxu0 0.0
    %958 = vmatpush1.msra.mxu0 0.0
    %959 = vmatprep.subr.mxu0 0.0
    %960 = vmatpush1.msra.mxu0 0.0
    %961 = vmatprep.subr.mxu0 0.0
    %962 = vmatpush1.msra.mxu0 0.0
    %963 = vmatprep.subr.mxu0 0.0
    %964 = vmatpush1.msra.mxu0 0.0
    %965 = vmatprep.subr.mxu0 0.0
    %966 = vmatpush1.msra.mxu0 0.0
    %967 = vmatprep.subr.mxu0 0.0
    %968 = vmatpush1.msra.mxu0 0.0
    %969 = vmatprep.subr.mxu0 0.0
    %970 = vmatpush1.msra.mxu0 0.0
    %971 = vmatprep.subr.mxu0 0.0
    %972 = vmatpush1.msra.mxu0 0.0
    %973 = vmatprep.subr.mxu0 0.0
    %974 = vmatpush1.msra.mxu0 0.0
    %975 = vmatprep.subr.mxu0 0.0
    %976 = vmatpush1.msra.mxu0 0.0
    %977 = vmatprep.subr.mxu0 0.0
    %978 = vmatpush1.msra.mxu0 0.0
    %979 = vmatprep.subr.mxu0 0.0
    %980 = vmatpush1.msra.mxu0 0.0
    %981 = vmatprep.subr.mxu0 0.0
    %982 = vmatpush1.msra.mxu0 0.0
    %983 = vmatprep.mubr.f32.mxu0 0.0
    %984 = vmatmul.mubr.f32.gmra.mrb[0].mxu0 %v914
    %v985 = vpop.f32.mrb[0].mxu0
    %v986 = vadd.f32 %v905, %v985
    %v987 = vpop.f32.mrb[0].mxu0
    %988 = vmatprep.mubr.f32.mxu0 0.0
    %989 = vmatmul.mubr.f32.gmra.mrb[0].mxu0 %v917
    %v990 = vpop.f32.mrb[0].mxu0
    %v991 = vadd.f32 %v910, %v990
    %v992 = vpop.f32.mrb[0].mxu0
    %993 = vdwg.mxu0
    %994 = vrot.lane.b32.xlu0 %v149, 112
    %v995 = vpop.permute.xlu0 %994
    %996 = vrot.lane.b32.xlu0 %v149, 80
    %v997 = vpop.permute.xlu0 %996
    %v998 = vsel %vm166, %v995, 0
    %v1000 = vsel %vm166, %v997, 0
    %1002 = vmatprep.subr.mxu0 0.0
    %1003 = vmatpush1.xpose.msra.mxu0 %v1000
    %1004 = vmatprep.subr.mxu0 0.0
    %1005 = vmatpush1.xpose.msra.mxu0 0.0
    %1006 = vmatprep.subr.mxu0 0.0
    %1007 = vmatpush1.xpose.msra.mxu0 0.0
    %1008 = vmatprep.subr.mxu0 0.0
    %1009 = vmatpush1.xpose.msra.mxu0 0.0
    %1010 = vmatprep.subr.mxu0 0.0
    %1011 = vmatpush1.xpose.msra.mxu0 0.0
    %1012 = vmatprep.subr.mxu0 0.0
    %1013 = vmatpush1.xpose.msra.mxu0 0.0
    %1014 = vmatprep.subr.mxu0 0.0
    %1015 = vmatpush1.xpose.msra.mxu0 0.0
    %1016 = vmatprep.subr.mxu0 0.0
    %1017 = vmatpush1.xpose.msra.mxu0 0.0
    %1018 = vmatprep.subr.mxu0 0.0
    %1019 = vmatpush1.xpose.msra.mxu0 0.0
    %1020 = vmatprep.subr.mxu0 0.0
    %1021 = vmatpush1.xpose.msra.mxu0 0.0
    %1022 = vmatprep.subr.mxu0 0.0
    %1023 = vmatpush1.xpose.msra.mxu0 0.0
    %1024 = vmatprep.subr.mxu0 0.0
    %1025 = vmatpush1.xpose.msra.mxu0 0.0
    %1026 = vmatprep.subr.mxu0 0.0
    %1027 = vmatpush1.xpose.msra.mxu0 0.0
    %1028 = vmatprep.subr.mxu0 0.0
    %1029 = vmatpush1.xpose.msra.mxu0 0.0
    %1030 = vmatprep.subr.mxu0 0.0
    %1031 = vmatpush1.xpose.msra.mxu0 0.0
    %1032 = vmatprep.subr.mxu0 0.0
    %1033 = vmatpush1.xpose.msra.mxu0 0.0
    %1034 = vmatprep.subr.mxu0 0.0
    %1035 = vmatpush1.xpose.msra.mxu0 0.0
    %1036 = vmatprep.subr.mxu0 0.0
    %1037 = vmatpush1.xpose.msra.mxu0 0.0
    %1038 = vmatprep.subr.mxu0 0.0
    %1039 = vmatpush1.xpose.msra.mxu0 0.0
    %1040 = vmatprep.subr.mxu0 0.0
    %1041 = vmatpush1.xpose.msra.mxu0 0.0
    %1042 = vmatprep.subr.mxu0 0.0
    %1043 = vmatpush1.xpose.msra.mxu0 0.0
    %1044 = vmatprep.subr.mxu0 0.0
    %1045 = vmatpush1.xpose.msra.mxu0 0.0
    %1046 = vmatprep.subr.mxu0 0.0
    %1047 = vmatpush1.xpose.msra.mxu0 0.0
    %1048 = vmatprep.subr.mxu0 0.0
    %1049 = vmatpush1.xpose.msra.mxu0 0.0
    %1050 = vmatprep.subr.mxu0 0.0
    %1051 = vmatpush1.xpose.msra.mxu0 0.0
    %1052 = vmatprep.subr.mxu0 0.0
    %1053 = vmatpush1.xpose.msra.mxu0 0.0
    %1054 = vmatprep.subr.mxu0 0.0
    %1055 = vmatpush1.xpose.msra.mxu0 0.0
    %1056 = vmatprep.subr.mxu0 0.0
    %1057 = vmatpush1.xpose.msra.mxu0 0.0
    %1058 = vmatprep.subr.mxu0 0.0
    %1059 = vmatpush1.xpose.msra.mxu0 0.0
    %1060 = vmatprep.subr.mxu0 0.0
    %1061 = vmatpush1.xpose.msra.mxu0 0.0
    %1062 = vmatprep.subr.mxu0 0.0
    %1063 = vmatpush1.xpose.msra.mxu0 0.0
    %1064 = vmatprep.subr.mxu0 0.0
    %1065 = vmatpush1.xpose.msra.mxu0 0.0
    %1066 = vmatprep.mubr.f32.mxu0 0.0
    %1067 = vmatmul.mubr.f32.gmra.mrb[0].mxu0 %v998
    %v1068 = vpop.f32.mrb[0].mxu0
    %v1069 = vadd.f32 0.0, %v1068
    %v1070 = vpop.f32.mrb[0].mxu0
    %1071 = vdwg.mxu0
    %1072 = vrot.lane.b32.xlu0 %v154, 112
    %v1073 = vpop.permute.xlu0 %1072
    %1074 = vrot.lane.b32.xlu0 %v154, 80
    %v1075 = vpop.permute.xlu0 %1074
    %v1076 = vsel %vm166, %v1073, 0
    %v1078 = vsel %vm166, %v1075, 0
    %1080 = vmatprep.subr.mxu0 0.0
    %1081 = vmatpush1.xpose.msra.mxu0 %v1078
    %1082 = vmatprep.subr.mxu0 0.0
    %1083 = vmatpush1.xpose.msra.mxu0 0.0
    %1084 = vmatprep.subr.mxu0 0.0
    %1085 = vmatpush1.xpose.msra.mxu0 0.0
    %1086 = vmatprep.subr.mxu0 0.0
    %1087 = vmatpush1.xpose.msra.mxu0 0.0
    %1088 = vmatprep.subr.mxu0 0.0
    %1089 = vmatpush1.xpose.msra.mxu0 0.0
    %1090 = vmatprep.subr.mxu0 0.0
    %1091 = vmatpush1.xpose.msra.mxu0 0.0
    %1092 = vmatprep.subr.mxu0 0.0
    %1093 = vmatpush1.xpose.msra.mxu0 0.0
    %1094 = vmatprep.subr.mxu0 0.0
    %1095 = vmatpush1.xpose.msra.mxu0 0.0
    %1096 = vmatprep.subr.mxu0 0.0
    %1097 = vmatpush1.xpose.msra.mxu0 0.0
    %1098 = vmatprep.subr.mxu0 0.0
    %1099 = vmatpush1.xpose.msra.mxu0 0.0
    %1100 = vmatprep.subr.mxu0 0.0
    %1101 = vmatpush1.xpose.msra.mxu0 0.0
    %1102 = vmatprep.subr.mxu0 0.0
    %1103 = vmatpush1.xpose.msra.mxu0 0.0
    %1104 = vmatprep.subr.mxu0 0.0
    %1105 = vmatpush1.xpose.msra.mxu0 0.0
    %1106 = vmatprep.subr.mxu0 0.0
    %1107 = vmatpush1.xpose.msra.mxu0 0.0
    %1108 = vmatprep.subr.mxu0 0.0
    %1109 = vmatpush1.xpose.msra.mxu0 0.0
    %1110 = vmatprep.subr.mxu0 0.0
    %1111 = vmatpush1.xpose.msra.mxu0 0.0
    %1112 = vmatprep.subr.mxu0 0.0
    %1113 = vmatpush1.xpose.msra.mxu0 0.0
    %1114 = vmatprep.subr.mxu0 0.0
    %1115 = vmatpush1.xpose.msra.mxu0 0.0
    %1116 = vmatprep.subr.mxu0 0.0
    %1117 = vmatpush1.xpose.msra.mxu0 0.0
    %1118 = vmatprep.subr.mxu0 0.0
    %1119 = vmatpush1.xpose.msra.mxu0 0.0
    %1120 = vmatprep.subr.mxu0 0.0
    %1121 = vmatpush1.xpose.msra.mxu0 0.0
    %1122 = vmatprep.subr.mxu0 0.0
    %1123 = vmatpush1.xpose.msra.mxu0 0.0
    %1124 = vmatprep.subr.mxu0 0.0
    %1125 = vmatpush1.xpose.msra.mxu0 0.0
    %1126 = vmatprep.subr.mxu0 0.0
    %1127 = vmatpush1.xpose.msra.mxu0 0.0
    %1128 = vmatprep.subr.mxu0 0.0
    %1129 = vmatpush1.xpose.msra.mxu0 0.0
    %1130 = vmatprep.subr.mxu0 0.0
    %1131 = vmatpush1.xpose.msra.mxu0 0.0
    %1132 = vmatprep.subr.mxu0 0.0
    %1133 = vmatpush1.xpose.msra.mxu0 0.0
    %1134 = vmatprep.subr.mxu0 0.0
    %1135 = vmatpush1.xpose.msra.mxu0 0.0
    %1136 = vmatprep.subr.mxu0 0.0
    %1137 = vmatpush1.xpose.msra.mxu0 0.0
    %1138 = vmatprep.subr.mxu0 0.0
    %1139 = vmatpush1.xpose.msra.mxu0 0.0
    %1140 = vmatprep.subr.mxu0 0.0
    %1141 = vmatpush1.xpose.msra.mxu0 0.0
    %1142 = vmatprep.subr.mxu0 0.0
    %1143 = vmatpush1.xpose.msra.mxu0 0.0
    %1144 = vmatprep.mubr.f32.mxu0 0.0
    %1145 = vmatmul.mubr.f32.gmra.mrb[0].mxu0 %v1076
    %v1146 = vpop.f32.mrb[0].mxu0
    %v1147 = vadd.f32 0.0, %v1146
    %v1148 = vpop.f32.mrb[0].mxu0
    %1149 = vdwg.mxu0
    %v1150 = vmul.f32 %v1069, 0.35355338
    %v1151 = vmul.f32 %v1147, 0.35355338
    %v1152 = vadd.f32 %v1150, %v162
    %v1153 = vadd.f32 %v1151, %v162
    %v1154 = vsel %vm166, %v1152, -inf
    %1155 = vmax.xlane.f32.xlu0 %v1154
    %v1156 = vpop.xlane.xlu0 %1155
    %v1157 = vsel %vm166, %v1153, -inf
    %1158 = vmax.xlane.f32.xlu0 %v1157
    %v1159 = vpop.xlane.xlu0 %1158
    %v1160 = vsub.f32 %v1152, %v1156
    %v1161 = vsub.f32 %v1153, %v1159
    %v1162 = vmul.f32 %v1160, 1.442695
    %v1163 = vpow.pop %v1162
    %v1164 = vmul.f32 %v1161, 1.442695
    %v1165 = vpow.pop %v1164
    %v1166 = vsel %vm166, %v1163, 0.0
    %1167 = vadd.xlane.f32.xlu0 %v1166
    %v1168 = vpop.xlane.xlu0 %1167
    %v1169 = vsel %vm166, %v1165, 0.0
    %1170 = vadd.xlane.f32.xlu0 %v1169
    %v1171 = vpop.xlane.xlu0 %1170
    %v1172 = vrcp.pop %v1168
    %v1173 = vmul.f32 %v1163, %v1172
    %v1174 = vrcp.pop %v1171
    %v1175 = vmul.f32 %v1165, %v1174
    %1176 = vrot.lane.b32.xlu0 %v149, 48
    %v1177 = vpop.permute.xlu0 %1176
    %v1180 = vsel %vm166, %v1173, 0
    %1182 = vmatprep.subr.mxu0 0.0
    %1183 = vmatpush1.msra.mxu0 %v1177
    %1184 = vmatprep.subr.mxu0 0.0
    %1185 = vmatpush1.msra.mxu0 0.0
    %1186 = vmatprep.subr.mxu0 0.0
    %1187 = vmatpush1.msra.mxu0 0.0
    %1188 = vmatprep.subr.mxu0 0.0
    %1189 = vmatpush1.msra.mxu0 0.0
    %1190 = vmatprep.subr.mxu0 0.0
    %1191 = vmatpush1.msra.mxu0 0.0
    %1192 = vmatprep.subr.mxu0 0.0
    %1193 = vmatpush1.msra.mxu0 0.0
    %1194 = vmatprep.subr.mxu0 0.0
    %1195 = vmatpush1.msra.mxu0 0.0
    %1196 = vmatprep.subr.mxu0 0.0
    %1197 = vmatpush1.msra.mxu0 0.0
    %1198 = vmatprep.subr.mxu0 0.0
    %1199 = vmatpush1.msra.mxu0 0.0
    %1200 = vmatprep.subr.mxu0 0.0
    %1201 = vmatpush1.msra.mxu0 0.0
    %1202 = vmatprep.subr.mxu0 0.0
    %1203 = vmatpush1.msra.mxu0 0.0
    %1204 = vmatprep.subr.mxu0 0.0
    %1205 = vmatpush1.msra.mxu0 0.0
    %1206 = vmatprep.subr.mxu0 0.0
    %1207 = vmatpush1.msra.mxu0 0.0
    %1208 = vmatprep.subr.mxu0 0.0
    %1209 = vmatpush1.msra.mxu0 0.0
    %1210 = vmatprep.subr.mxu0 0.0
    %1211 = vmatpush1.msra.mxu0 0.0
    %1212 = vmatprep.subr.mxu0 0.0
    %1213 = vmatpush1.msra.mxu0 0.0
    %1214 = vmatprep.subr.mxu0 0.0
    %1215 = vmatpush1.msra.mxu0 0.0
    %1216 = vmatprep.subr.mxu0 0.0
    %1217 = vmatpush1.msra.mxu0 0.0
    %1218 = vmatprep.subr.mxu0 0.0
    %1219 = vmatpush1.msra.mxu0 0.0
    %1220 = vmatprep.subr.mxu0 0.0
    %1221 = vmatpush1.msra.mxu0 0.0
    %1222 = vmatprep.subr.mxu0 0.0
    %1223 = vmatpush1.msra.mxu0 0.0
    %1224 = vmatprep.subr.mxu0 0.0
    %1225 = vmatpush1.msra.mxu0 0.0
    %1226 = vmatprep.subr.mxu0 0.0
    %1227 = vmatpush1.msra.mxu0 0.0
    %1228 = vmatprep.subr.mxu0 0.0
    %1229 = vmatpush1.msra.mxu0 0.0
    %1230 = vmatprep.subr.mxu0 0.0
    %1231 = vmatpush1.msra.mxu0 0.0
    %1232 = vmatprep.subr.mxu0 0.0
    %1233 = vmatpush1.msra.mxu0 0.0
    %1234 = vmatprep.subr.mxu0 0.0
    %1235 = vmatpush1.msra.mxu0 0.0
    %1236 = vmatprep.subr.mxu0 0.0
    %1237 = vmatpush1.msra.mxu0 0.0
    %1238 = vmatprep.subr.mxu0 0.0
    %1239 = vmatpush1.msra.mxu0 0.0
    %1240 = vmatprep.subr.mxu0 0.0
    %1241 = vmatpush1.msra.mxu0 0.0
    %1242 = vmatprep.subr.mxu0 0.0
    %1243 = vmatpush1.msra.mxu0 0.0
    %1244 = vmatprep.subr.mxu0 0.0
    %1245 = vmatpush1.msra.mxu0 0.0
    %1246 = vmatprep.mubr.f32.mxu0 0.0
    %1247 = vmatmul.mubr.f32.gmra.mrb[0].mxu0 %v1180
    %v1248 = vpop.f32.mrb[0].mxu0
    %v1249 = vadd.f32 0.0, %v1248
    %v1250 = vpop.f32.mrb[0].mxu0
    %1251 = vdwg.mxu0
    %1252 = vrot.lane.b32.xlu0 %v154, 48
    %v1253 = vpop.permute.xlu0 %1252
    %v1256 = vsel %vm166, %v1175, 0
    %1258 = vmatprep.subr.mxu0 0.0
    %1259 = vmatpush1.msra.mxu0 %v1253
    %1260 = vmatprep.subr.mxu0 0.0
    %1261 = vmatpush1.msra.mxu0 0.0
    %1262 = vmatprep.subr.mxu0 0.0
    %1263 = vmatpush1.msra.mxu0 0.0
    %1264 = vmatprep.subr.mxu0 0.0
    %1265 = vmatpush1.msra.mxu0 0.0
    %1266 = vmatprep.subr.mxu0 0.0
    %1267 = vmatpush1.msra.mxu0 0.0
    %1268 = vmatprep.subr.mxu0 0.0
    %1269 = vmatpush1.msra.mxu0 0.0
    %1270 = vmatprep.subr.mxu0 0.0
    %1271 = vmatpush1.msra.mxu0 0.0
    %1272 = vmatprep.subr.mxu0 0.0
    %1273 = vmatpush1.msra.mxu0 0.0
    %1274 = vmatprep.subr.mxu0 0.0
    %1275 = vmatpush1.msra.mxu0 0.0
    %1276 = vmatprep.subr.mxu0 0.0
    %1277 = vmatpush1.msra.mxu0 0.0
    %1278 = vmatprep.subr.mxu0 0.0
    %1279 = vmatpush1.msra.mxu0 0.0
    %1280 = vmatprep.subr.mxu0 0.0
    %1281 = vmatpush1.msra.mxu0 0.0
    %1282 = vmatprep.subr.mxu0 0.0
    %1283 = vmatpush1.msra.mxu0 0.0
    %1284 = vmatprep.subr.mxu0 0.0
    %1285 = vmatpush1.msra.mxu0 0.0
    %1286 = vmatprep.subr.mxu0 0.0
    %1287 = vmatpush1.msra.mxu0 0.0
    %1288 = vmatprep.subr.mxu0 0.0
    %1289 = vmatpush1.msra.mxu0 0.0
    %1290 = vmatprep.subr.mxu0 0.0
    %1291 = vmatpush1.msra.mxu0 0.0
    %1292 = vmatprep.subr.mxu0 0.0
    %1293 = vmatpush1.msra.mxu0 0.0
    %1294 = vmatprep.subr.mxu0 0.0
    %1295 = vmatpush1.msra.mxu0 0.0
    %1296 = vmatprep.subr.mxu0 0.0
    %1297 = vmatpush1.msra.mxu0 0.0
    %1298 = vmatprep.subr.mxu0 0.0
    %1299 = vmatpush1.msra.mxu0 0.0
    %1300 = vmatprep.subr.mxu0 0.0
    %1301 = vmatpush1.msra.mxu0 0.0
    %1302 = vmatprep.subr.mxu0 0.0
    %1303 = vmatpush1.msra.mxu0 0.0
    %1304 = vmatprep.subr.mxu0 0.0
    %1305 = vmatpush1.msra.mxu0 0.0
    %1306 = vmatprep.subr.mxu0 0.0
    %1307 = vmatpush1.msra.mxu0 0.0
    %1308 = vmatprep.subr.mxu0 0.0
    %1309 = vmatpush1.msra.mxu0 0.0
    %1310 = vmatprep.subr.mxu0 0.0
    %1311 = vmatpush1.msra.mxu0 0.0
    %1312 = vmatprep.subr.mxu0 0.0
    %1313 = vmatpush1.msra.mxu0 0.0
    %1314 = vmatprep.subr.mxu0 0.0
    %1315 = vmatpush1.msra.mxu0 0.0
    %1316 = vmatprep.subr.mxu0 0.0
    %1317 = vmatpush1.msra.mxu0 0.0
    %1318 = vmatprep.subr.mxu0 0.0
    %1319 = vmatpush1.msra.mxu0 0.0
    %1320 = vmatprep.subr.mxu0 0.0
    %1321 = vmatpush1.msra.mxu0 0.0
    %1322 = vmatprep.mubr.f32.mxu0 0.0
    %1323 = vmatmul.mubr.f32.gmra.mrb[0].mxu0 %v1256
    %v1324 = vpop.f32.mrb[0].mxu0
    %v1325 = vadd.f32 0.0, %v1324
    %v1326 = vpop.f32.mrb[0].mxu0
    %1327 = vdwg.mxu0
    %v1328 = vld [vmem:[#allocation7 + $0x10] sm:$0xff]
    %v1330 = vsel %vm166, %v1249, 0
    %v1333 = vsel %vm166, %v1325, 0
    %1335 = vmatprep.subr.mxu0 0.0
    %1336 = vmatpush1.msra.mxu0 %v1328
    %1337 = vmatprep.subr.mxu0 0.0
    %1338 = vmatpush1.msra.mxu0 0.0
    %1339 = vmatprep.subr.mxu0 0.0
    %1340 = vmatpush1.msra.mxu0 0.0
    %1341 = vmatprep.subr.mxu0 0.0
    %1342 = vmatpush1.msra.mxu0 0.0
    %1343 = vmatprep.subr.mxu0 0.0
    %1344 = vmatpush1.msra.mxu0 0.0
    %1345 = vmatprep.subr.mxu0 0.0
    %1346 = vmatpush1.msra.mxu0 0.0
    %1347 = vmatprep.subr.mxu0 0.0
    %1348 = vmatpush1.msra.mxu0 0.0
    %1349 = vmatprep.subr.mxu0 0.0
    %1350 = vmatpush1.msra.mxu0 0.0
    %1351 = vmatprep.subr.mxu0 0.0
    %1352 = vmatpush1.msra.mxu0 0.0
    %1353 = vmatprep.subr.mxu0 0.0
    %1354 = vmatpush1.msra.mxu0 0.0
    %1355 = vmatprep.subr.mxu0 0.0
    %1356 = vmatpush1.msra.mxu0 0.0
    %1357 = vmatprep.subr.mxu0 0.0
    %1358 = vmatpush1.msra.mxu0 0.0
    %1359 = vmatprep.subr.mxu0 0.0
    %1360 = vmatpush1.msra.mxu0 0.0
    %1361 = vmatprep.subr.mxu0 0.0
    %1362 = vmatpush1.msra.mxu0 0.0
    %1363 = vmatprep.subr.mxu0 0.0
    %1364 = vmatpush1.msra.mxu0 0.0
    %1365 = vmatprep.subr.mxu0 0.0
    %1366 = vmatpush1.msra.mxu0 0.0
    %1367 = vmatprep.subr.mxu0 0.0
    %1368 = vmatpush1.msra.mxu0 0.0
    %1369 = vmatprep.subr.mxu0 0.0
    %1370 = vmatpush1.msra.mxu0 0.0
    %1371 = vmatprep.subr.mxu0 0.0
    %1372 = vmatpush1.msra.mxu0 0.0
    %1373 = vmatprep.subr.mxu0 0.0
    %1374 = vmatpush1.msra.mxu0 0.0
    %1375 = vmatprep.subr.mxu0 0.0
    %1376 = vmatpush1.msra.mxu0 0.0
    %1377 = vmatprep.subr.mxu0 0.0
    %1378 = vmatpush1.msra.mxu0 0.0
    %1379 = vmatprep.subr.mxu0 0.0
    %1380 = vmatpush1.msra.mxu0 0.0
    %1381 = vmatprep.subr.mxu0 0.0
    %1382 = vmatpush1.msra.mxu0 0.0
    %1383 = vmatprep.subr.mxu0 0.0
    %1384 = vmatpush1.msra.mxu0 0.0
    %1385 = vmatprep.subr.mxu0 0.0
    %1386 = vmatpush1.msra.mxu0 0.0
    %1387 = vmatprep.subr.mxu0 0.0
    %1388 = vmatpush1.msra.mxu0 0.0
    %1389 = vmatprep.subr.mxu0 0.0
    %1390 = vmatpush1.msra.mxu0 0.0
    %1391 = vmatprep.subr.mxu0 0.0
    %1392 = vmatpush1.msra.mxu0 0.0
    %1393 = vmatprep.subr.mxu0 0.0
    %1394 = vmatpush1.msra.mxu0 0.0
    %1395 = vmatprep.subr.mxu0 0.0
    %1396 = vmatpush1.msra.mxu0 0.0
    %1397 = vmatprep.subr.mxu0 0.0
    %1398 = vmatpush1.msra.mxu0 0.0
    %1399 = vmatprep.mubr.f32.mxu0 0.0
    %1400 = vmatmul.mubr.f32.gmra.mrb[0].mxu0 %v1330
    %v1401 = vpop.f32.mrb[0].mxu0
    %v1402 = vadd.f32 0.0, %v1401
    %v1403 = vpop.f32.mrb[0].mxu0
    %1404 = vmatprep.mubr.f32.mxu0 0.0
    %1405 = vmatmul.mubr.f32.gmra.mrb[0].mxu0 %v1333
    %v1406 = vpop.f32.mrb[0].mxu0
    %v1407 = vadd.f32 0.0, %v1406
    %v1408 = vpop.f32.mrb[0].mxu0
    %1409 = vdwg.mxu0
    %v1410 = vadd.f32 %v986, %v1402
    %v1411 = vadd.f32 %v991, %v1407
    %1412 = vrot.lane.b32.xlu0 %v149, 104
    %v1413 = vpop.permute.xlu0 %1412
    %1414 = vrot.lane.b32.xlu0 %v149, 72
    %v1415 = vpop.permute.xlu0 %1414
    %v1416 = vsel %vm166, %v1413, 0
    %v1418 = vsel %vm166, %v1415, 0
    %1420 = vmatprep.subr.mxu0 0.0
    %1421 = vmatpush1.xpose.msra.mxu0 %v1418
    %1422 = vmatprep.subr.mxu0 0.0
    %1423 = vmatpush1.xpose.msra.mxu0 0.0
    %1424 = vmatprep.subr.mxu0 0.0
    %1425 = vmatpush1.xpose.msra.mxu0 0.0
    %1426 = vmatprep.subr.mxu0 0.0
    %1427 = vmatpush1.xpose.msra.mxu0 0.0
    %1428 = vmatprep.subr.mxu0 0.0
    %1429 = vmatpush1.xpose.msra.mxu0 0.0
    %1430 = vmatprep.subr.mxu0 0.0
    %1431 = vmatpush1.xpose.msra.mxu0 0.0
    %1432 = vmatprep.subr.mxu0 0.0
    %1433 = vmatpush1.xpose.msra.mxu0 0.0
    %1434 = vmatprep.subr.mxu0 0.0
    %1435 = vmatpush1.xpose.msra.mxu0 0.0
    %1436 = vmatprep.subr.mxu0 0.0
    %1437 = vmatpush1.xpose.msra.mxu0 0.0
    %1438 = vmatprep.subr.mxu0 0.0
    %1439 = vmatpush1.xpose.msra.mxu0 0.0
    %1440 = vmatprep.subr.mxu0 0.0
    %1441 = vmatpush1.xpose.msra.mxu0 0.0
    %1442 = vmatprep.subr.mxu0 0.0
    %1443 = vmatpush1.xpose.msra.mxu0 0.0
    %1444 = vmatprep.subr.mxu0 0.0
    %1445 = vmatpush1.xpose.msra.mxu0 0.0
    %1446 = vmatprep.subr.mxu0 0.0
    %1447 = vmatpush1.xpose.msra.mxu0 0.0
    %1448 = vmatprep.subr.mxu0 0.0
    %1449 = vmatpush1.xpose.msra.mxu0 0.0
    %1450 = vmatprep.subr.mxu0 0.0
    %1451 = vmatpush1.xpose.msra.mxu0 0.0
    %1452 = vmatprep.subr.mxu0 0.0
    %1453 = vmatpush1.xpose.msra.mxu0 0.0
    %1454 = vmatprep.subr.mxu0 0.0
    %1455 = vmatpush1.xpose.msra.mxu0 0.0
    %1456 = vmatprep.subr.mxu0 0.0
    %1457 = vmatpush1.xpose.msra.mxu0 0.0
    %1458 = vmatprep.subr.mxu0 0.0
    %1459 = vmatpush1.xpose.msra.mxu0 0.0
    %1460 = vmatprep.subr.mxu0 0.0
    %1461 = vmatpush1.xpose.msra.mxu0 0.0
    %1462 = vmatprep.subr.mxu0 0.0
    %1463 = vmatpush1.xpose.msra.mxu0 0.0
    %1464 = vmatprep.subr.mxu0 0.0
    %1465 = vmatpush1.xpose.msra.mxu0 0.0
    %1466 = vmatprep.subr.mxu0 0.0
    %1467 = vmatpush1.xpose.msra.mxu0 0.0
    %1468 = vmatprep.subr.mxu0 0.0
    %1469 = vmatpush1.xpose.msra.mxu0 0.0
    %1470 = vmatprep.subr.mxu0 0.0
    %1471 = vmatpush1.xpose.msra.mxu0 0.0
    %1472 = vmatprep.subr.mxu0 0.0
    %1473 = vmatpush1.xpose.msra.mxu0 0.0
    %1474 = vmatprep.subr.mxu0 0.0
    %1475 = vmatpush1.xpose.msra.mxu0 0.0
    %1476 = vmatprep.subr.mxu0 0.0
    %1477 = vmatpush1.xpose.msra.mxu0 0.0
    %1478 = vmatprep.subr.mxu0 0.0
    %1479 = vmatpush1.xpose.msra.mxu0 0.0
    %1480 = vmatprep.subr.mxu0 0.0
    %1481 = vmatpush1.xpose.msra.mxu0 0.0
    %1482 = vmatprep.subr.mxu0 0.0
    %1483 = vmatpush1.xpose.msra.mxu0 0.0
    %1484 = vmatprep.mubr.f32.mxu0 0.0
    %1485 = vmatmul.mubr.f32.gmra.mrb[0].mxu0 %v1416
    %v1486 = vpop.f32.mrb[0].mxu0
    %v1487 = vadd.f32 0.0, %v1486
    %v1488 = vpop.f32.mrb[0].mxu0
    %1489 = vdwg.mxu0
    %1490 = vrot.lane.b32.xlu0 %v154, 104
    %v1491 = vpop.permute.xlu0 %1490
    %1492 = vrot.lane.b32.xlu0 %v154, 72
    %v1493 = vpop.permute.xlu0 %1492
    %v1494 = vsel %vm166, %v1491, 0
    %v1496 = vsel %vm166, %v1493, 0
    %1498 = vmatprep.subr.mxu0 0.0
    %1499 = vmatpush1.xpose.msra.mxu0 %v1496
    %1500 = vmatprep.subr.mxu0 0.0
    %1501 = vmatpush1.xpose.msra.mxu0 0.0
    %1502 = vmatprep.subr.mxu0 0.0
    %1503 = vmatpush1.xpose.msra.mxu0 0.0
    %1504 = vmatprep.subr.mxu0 0.0
    %1505 = vmatpush1.xpose.msra.mxu0 0.0
    %1506 = vmatprep.subr.mxu0 0.0
    %1507 = vmatpush1.xpose.msra.mxu0 0.0
    %1508 = vmatprep.subr.mxu0 0.0
    %1509 = vmatpush1.xpose.msra.mxu0 0.0
    %1510 = vmatprep.subr.mxu0 0.0
    %1511 = vmatpush1.xpose.msra.mxu0 0.0
    %1512 = vmatprep.subr.mxu0 0.0
    %1513 = vmatpush1.xpose.msra.mxu0 0.0
    %1514 = vmatprep.subr.mxu0 0.0
    %1515 = vmatpush1.xpose.msra.mxu0 0.0
    %1516 = vmatprep.subr.mxu0 0.0
    %1517 = vmatpush1.xpose.msra.mxu0 0.0
    %1518 = vmatprep.subr.mxu0 0.0
    %1519 = vmatpush1.xpose.msra.mxu0 0.0
    %1520 = vmatprep.subr.mxu0 0.0
    %1521 = vmatpush1.xpose.msra.mxu0 0.0
    %1522 = vmatprep.subr.mxu0 0.0
    %1523 = vmatpush1.xpose.msra.mxu0 0.0
    %1524 = vmatprep.subr.mxu0 0.0
    %1525 = vmatpush1.xpose.msra.mxu0 0.0
    %1526 = vmatprep.subr.mxu0 0.0
    %1527 = vmatpush1.xpose.msra.mxu0 0.0
    %1528 = vmatprep.subr.mxu0 0.0
    %1529 = vmatpush1.xpose.msra.mxu0 0.0
    %1530 = vmatprep.subr.mxu0 0.0
    %1531 = vmatpush1.xpose.msra.mxu0 0.0
    %1532 = vmatprep.subr.mxu0 0.0
    %1533 = vmatpush1.xpose.msra.mxu0 0.0
    %1534 = vmatprep.subr.mxu0 0.0
    %1535 = vmatpush1.xpose.msra.mxu0 0.0
    %1536 = vmatprep.subr.mxu0 0.0
    %1537 = vmatpush1.xpose.msra.mxu0 0.0
    %1538 = vmatprep.subr.mxu0 0.0
    %1539 = vmatpush1.xpose.msra.mxu0 0.0
    %1540 = vmatprep.subr.mxu0 0.0
    %1541 = vmatpush1.xpose.msra.mxu0 0.0
    %1542 = vmatprep.subr.mxu0 0.0
    %1543 = vmatpush1.xpose.msra.mxu0 0.0
    %1544 = vmatprep.subr.mxu0 0.0
    %1545 = vmatpush1.xpose.msra.mxu0 0.0
    %1546 = vmatprep.subr.mxu0 0.0
    %1547 = vmatpush1.xpose.msra.mxu0 0.0
    %1548 = vmatprep.subr.mxu0 0.0
    %1549 = vmatpush1.xpose.msra.mxu0 0.0
    %1550 = vmatprep.subr.mxu0 0.0
    %1551 = vmatpush1.xpose.msra.mxu0 0.0
    %1552 = vmatprep.subr.mxu0 0.0
    %1553 = vmatpush1.xpose.msra.mxu0 0.0
    %1554 = vmatprep.subr.mxu0 0.0
    %1555 = vmatpush1.xpose.msra.mxu0 0.0
    %1556 = vmatprep.subr.mxu0 0.0
    %1557 = vmatpush1.xpose.msra.mxu0 0.0
    %1558 = vmatprep.subr.mxu0 0.0
    %1559 = vmatpush1.xpose.msra.mxu0 0.0
    %1560 = vmatprep.subr.mxu0 0.0
    %1561 = vmatpush1.xpose.msra.mxu0 0.0
    %1562 = vmatprep.mubr.f32.mxu0 0.0
    %1563 = vmatmul.mubr.f32.gmra.mrb[0].mxu0 %v1494
    %v1564 = vpop.f32.mrb[0].mxu0
    %v1565 = vadd.f32 0.0, %v1564
    %v1566 = vpop.f32.mrb[0].mxu0
    %1567 = vdwg.mxu0
    %v1568 = vmul.f32 %v1487, 0.35355338
    %v1569 = vmul.f32 %v1565, 0.35355338
    %v1570 = vadd.f32 %v1568, %v162
    %v1571 = vadd.f32 %v1569, %v162
    %v1572 = vsel %vm166, %v1570, -inf
    %1573 = vmax.xlane.f32.xlu0 %v1572
    %v1574 = vpop.xlane.xlu0 %1573
    %v1575 = vsel %vm166, %v1571, -inf
    %1576 = vmax.xlane.f32.xlu0 %v1575
    %v1577 = vpop.xlane.xlu0 %1576
    %v1578 = vsub.f32 %v1570, %v1574
    %v1579 = vsub.f32 %v1571, %v1577
    %v1580 = vmul.f32 %v1578, 1.442695
    %v1581 = vpow.pop %v1580
    %v1582 = vmul.f32 %v1579, 1.442695
    %v1583 = vpow.pop %v1582
    %v1584 = vsel %vm166, %v1581, 0.0
    %1585 = vadd.xlane.f32.xlu0 %v1584
    %v1586 = vpop.xlane.xlu0 %1585
    %v1587 = vsel %vm166, %v1583, 0.0
    %1588 = vadd.xlane.f32.xlu0 %v1587
    %v1589 = vpop.xlane.xlu0 %1588
    %v1590 = vrcp.pop %v1586
    %v1591 = vmul.f32 %v1581, %v1590
    %v1592 = vrcp.pop %v1589
    %v1593 = vmul.f32 %v1583, %v1592
    %1594 = vrot.lane.b32.xlu0 %v149, 40
    %v1595 = vpop.permute.xlu0 %1594
    %v1598 = vsel %vm166, %v1591, 0
    %1600 = vmatprep.subr.mxu0 0.0
    %1601 = vmatpush1.msra.mxu0 %v1595
    %1602 = vmatprep.subr.mxu0 0.0
    %1603 = vmatpush1.msra.mxu0 0.0
    %1604 = vmatprep.subr.mxu0 0.0
    %1605 = vmatpush1.msra.mxu0 0.0
    %1606 = vmatprep.subr.mxu0 0.0
    %1607 = vmatpush1.msra.mxu0 0.0
    %1608 = vmatprep.subr.mxu0 0.0
    %1609 = vmatpush1.msra.mxu0 0.0
    %1610 = vmatprep.subr.mxu0 0.0
    %1611 = vmatpush1.msra.mxu0 0.0
    %1612 = vmatprep.subr.mxu0 0.0
    %1613 = vmatpush1.msra.mxu0 0.0
    %1614 = vmatprep.subr.mxu0 0.0
    %1615 = vmatpush1.msra.mxu0 0.0
    %1616 = vmatprep.subr.mxu0 0.0
    %1617 = vmatpush1.msra.mxu0 0.0
    %1618 = vmatprep.subr.mxu0 0.0
    %1619 = vmatpush1.msra.mxu0 0.0
    %1620 = vmatprep.subr.mxu0 0.0
    %1621 = vmatpush1.msra.mxu0 0.0
    %1622 = vmatprep.subr.mxu0 0.0
    %1623 = vmatpush1.msra.mxu0 0.0
    %1624 = vmatprep.subr.mxu0 0.0
    %1625 = vmatpush1.msra.mxu0 0.0
    %1626 = vmatprep.subr.mxu0 0.0
    %1627 = vmatpush1.msra.mxu0 0.0
    %1628 = vmatprep.subr.mxu0 0.0
    %1629 = vmatpush1.msra.mxu0 0.0
    %1630 = vmatprep.subr.mxu0 0.0
    %1631 = vmatpush1.msra.mxu0 0.0
    %1632 = vmatprep.subr.mxu0 0.0
    %1633 = vmatpush1.msra.mxu0 0.0
    %1634 = vmatprep.subr.mxu0 0.0
    %1635 = vmatpush1.msra.mxu0 0.0
    %1636 = vmatprep.subr.mxu0 0.0
    %1637 = vmatpush1.msra.mxu0 0.0
    %1638 = vmatprep.subr.mxu0 0.0
    %1639 = vmatpush1.msra.mxu0 0.0
    %1640 = vmatprep.subr.mxu0 0.0
    %1641 = vmatpush1.msra.mxu0 0.0
    %1642 = vmatprep.subr.mxu0 0.0
    %1643 = vmatpush1.msra.mxu0 0.0
    %1644 = vmatprep.subr.mxu0 0.0
    %1645 = vmatpush1.msra.mxu0 0.0
    %1646 = vmatprep.subr.mxu0 0.0
    %1647 = vmatpush1.msra.mxu0 0.0
    %1648 = vmatprep.subr.mxu0 0.0
    %1649 = vmatpush1.msra.mxu0 0.0
    %1650 = vmatprep.subr.mxu0 0.0
    %1651 = vmatpush1.msra.mxu0 0.0
    %1652 = vmatprep.subr.mxu0 0.0
    %1653 = vmatpush1.msra.mxu0 0.0
    %1654 = vmatprep.subr.mxu0 0.0
    %1655 = vmatpush1.msra.mxu0 0.0
    %1656 = vmatprep.subr.mxu0 0.0
    %1657 = vmatpush1.msra.mxu0 0.0
    %1658 = vmatprep.subr.mxu0 0.0
    %1659 = vmatpush1.msra.mxu0 0.0
    %1660 = vmatprep.subr.mxu0 0.0
    %1661 = vmatpush1.msra.mxu0 0.0
    %1662 = vmatprep.subr.mxu0 0.0
    %1663 = vmatpush1.msra.mxu0 0.0
    %1664 = vmatprep.mubr.f32.mxu0 0.0
    %1665 = vmatmul.mubr.f32.gmra.mrb[0].mxu0 %v1598
    %v1666 = vpop.f32.mrb[0].mxu0
    %v1667 = vadd.f32 0.0, %v1666
    %v1668 = vpop.f32.mrb[0].mxu0
    %1669 = vdwg.mxu0
    %1670 = vrot.lane.b32.xlu0 %v154, 40
    %v1671 = vpop.permute.xlu0 %1670
    %v1674 = vsel %vm166, %v1593, 0
    %1676 = vmatprep.subr.mxu0 0.0
    %1677 = vmatpush1.msra.mxu0 %v1671
    %1678 = vmatprep.subr.mxu0 0.0
    %1679 = vmatpush1.msra.mxu0 0.0
    %1680 = vmatprep.subr.mxu0 0.0
    %1681 = vmatpush1.msra.mxu0 0.0
    %1682 = vmatprep.subr.mxu0 0.0
    %1683 = vmatpush1.msra.mxu0 0.0
    %1684 = vmatprep.subr.mxu0 0.0
    %1685 = vmatpush1.msra.mxu0 0.0
    %1686 = vmatprep.subr.mxu0 0.0
    %1687 = vmatpush1.msra.mxu0 0.0
    %1688 = vmatprep.subr.mxu0 0.0
    %1689 = vmatpush1.msra.mxu0 0.0
    %1690 = vmatprep.subr.mxu0 0.0
    %1691 = vmatpush1.msra.mxu0 0.0
    %1692 = vmatprep.subr.mxu0 0.0
    %1693 = vmatpush1.msra.mxu0 0.0
    %1694 = vmatprep.subr.mxu0 0.0
    %1695 = vmatpush1.msra.mxu0 0.0
    %1696 = vmatprep.subr.mxu0 0.0
    %1697 = vmatpush1.msra.mxu0 0.0
    %1698 = vmatprep.subr.mxu0 0.0
    %1699 = vmatpush1.msra.mxu0 0.0
    %1700 = vmatprep.subr.mxu0 0.0
    %1701 = vmatpush1.msra.mxu0 0.0
    %1702 = vmatprep.subr.mxu0 0.0
    %1703 = vmatpush1.msra.mxu0 0.0
    %1704 = vmatprep.subr.mxu0 0.0
    %1705 = vmatpush1.msra.mxu0 0.0
    %1706 = vmatprep.subr.mxu0 0.0
    %1707 = vmatpush1.msra.mxu0 0.0
    %1708 = vmatprep.subr.mxu0 0.0
    %1709 = vmatpush1.msra.mxu0 0.0
    %1710 = vmatprep.subr.mxu0 0.0
    %1711 = vmatpush1.msra.mxu0 0.0
    %1712 = vmatprep.subr.mxu0 0.0
    %1713 = vmatpush1.msra.mxu0 0.0
    %1714 = vmatprep.subr.mxu0 0.0
    %1715 = vmatpush1.msra.mxu0 0.0
    %1716 = vmatprep.subr.mxu0 0.0
    %1717 = vmatpush1.msra.mxu0 0.0
    %1718 = vmatprep.subr.mxu0 0.0
    %1719 = vmatpush1.msra.mxu0 0.0
    %1720 = vmatprep.subr.mxu0 0.0
    %1721 = vmatpush1.msra.mxu0 0.0
    %1722 = vmatprep.subr.mxu0 0.0
    %1723 = vmatpush1.msra.mxu0 0.0
    %1724 = vmatprep.subr.mxu0 0.0
    %1725 = vmatpush1.msra.mxu0 0.0
    %1726 = vmatprep.subr.mxu0 0.0
    %1727 = vmatpush1.msra.mxu0 0.0
    %1728 = vmatprep.subr.mxu0 0.0
    %1729 = vmatpush1.msra.mxu0 0.0
    %1730 = vmatprep.subr.mxu0 0.0
    %1731 = vmatpush1.msra.mxu0 0.0
    %1732 = vmatprep.subr.mxu0 0.0
    %1733 = vmatpush1.msra.mxu0 0.0
    %1734 = vmatprep.subr.mxu0 0.0
    %1735 = vmatpush1.msra.mxu0 0.0
    %1736 = vmatprep.subr.mxu0 0.0
    %1737 = vmatpush1.msra.mxu0 0.0
    %1738 = vmatprep.subr.mxu0 0.0
    %1739 = vmatpush1.msra.mxu0 0.0
    %1740 = vmatprep.mubr.f32.mxu0 0.0
    %1741 = vmatmul.mubr.f32.gmra.mrb[0].mxu0 %v1674
    %v1742 = vpop.f32.mrb[0].mxu0
    %v1743 = vadd.f32 0.0, %v1742
    %v1744 = vpop.f32.mrb[0].mxu0
    %1745 = vdwg.mxu0
    %v1746 = vld [vmem:[#allocation7 + $0x18] sm:$0xff]
    %v1748 = vsel %vm166, %v1667, 0
    %v1751 = vsel %vm166, %v1743, 0
    %1753 = vmatprep.subr.mxu0 0.0
    %1754 = vmatpush1.msra.mxu0 %v1746
    %1755 = vmatprep.subr.mxu0 0.0
    %1756 = vmatpush1.msra.mxu0 0.0
    %1757 = vmatprep.subr.mxu0 0.0
    %1758 = vmatpush1.msra.mxu0 0.0
    %1759 = vmatprep.subr.mxu0 0.0
    %1760 = vmatpush1.msra.mxu0 0.0
    %1761 = vmatprep.subr.mxu0 0.0
    %1762 = vmatpush1.msra.mxu0 0.0
    %1763 = vmatprep.subr.mxu0 0.0
    %1764 = vmatpush1.msra.mxu0 0.0
    %1765 = vmatprep.subr.mxu0 0.0
    %1766 = vmatpush1.msra.mxu0 0.0
    %1767 = vmatprep.subr.mxu0 0.0
    %1768 = vmatpush1.msra.mxu0 0.0
    %1769 = vmatprep.subr.mxu0 0.0
    %1770 = vmatpush1.msra.mxu0 0.0
    %1771 = vmatprep.subr.mxu0 0.0
    %1772 = vmatpush1.msra.mxu0 0.0
    %1773 = vmatprep.subr.mxu0 0.0
    %1774 = vmatpush1.msra.mxu0 0.0
    %1775 = vmatprep.subr.mxu0 0.0
    %1776 = vmatpush1.msra.mxu0 0.0
    %1777 = vmatprep.subr.mxu0 0.0
    %1778 = vmatpush1.msra.mxu0 0.0
    %1779 = vmatprep.subr.mxu0 0.0
    %1780 = vmatpush1.msra.mxu0 0.0
    %1781 = vmatprep.subr.mxu0 0.0
    %1782 = vmatpush1.msra.mxu0 0.0
    %1783 = vmatprep.subr.mxu0 0.0
    %1784 = vmatpush1.msra.mxu0 0.0
    %1785 = vmatprep.subr.mxu0 0.0
    %1786 = vmatpush1.msra.mxu0 0.0
    %1787 = vmatprep.subr.mxu0 0.0
    %1788 = vmatpush1.msra.mxu0 0.0
    %1789 = vmatprep.subr.mxu0 0.0
    %1790 = vmatpush1.msra.mxu0 0.0
    %1791 = vmatprep.subr.mxu0 0.0
    %1792 = vmatpush1.msra.mxu0 0.0
    %1793 = vmatprep.subr.mxu0 0.0
    %1794 = vmatpush1.msra.mxu0 0.0
    %1795 = vmatprep.subr.mxu0 0.0
    %1796 = vmatpush1.msra.mxu0 0.0
    %1797 = vmatprep.subr.mxu0 0.0
    %1798 = vmatpush1.msra.mxu0 0.0
    %1799 = vmatprep.subr.mxu0 0.0
    %1800 = vmatpush1.msra.mxu0 0.0
    %1801 = vmatprep.subr.mxu0 0.0
    %1802 = vmatpush1.msra.mxu0 0.0
    %1803 = vmatprep.subr.mxu0 0.0
    %1804 = vmatpush1.msra.mxu0 0.0
    %1805 = vmatprep.subr.mxu0 0.0
    %1806 = vmatpush1.msra.mxu0 0.0
    %1807 = vmatprep.subr.mxu0 0.0
    %1808 = vmatpush1.msra.mxu0 0.0
    %1809 = vmatprep.subr.mxu0 0.0
    %1810 = vmatpush1.msra.mxu0 0.0
    %1811 = vmatprep.subr.mxu0 0.0
    %1812 = vmatpush1.msra.mxu0 0.0
    %1813 = vmatprep.subr.mxu0 0.0
    %1814 = vmatpush1.msra.mxu0 0.0
    %1815 = vmatprep.subr.mxu0 0.0
    %1816 = vmatpush1.msra.mxu0 0.0
    %1817 = vmatprep.mubr.f32.mxu0 0.0
    %1818 = vmatmul.mubr.f32.gmra.mrb[0].mxu0 %v1748
    %v1819 = vpop.f32.mrb[0].mxu0
    %v1820 = vadd.f32 0.0, %v1819
    %v1821 = vpop.f32.mrb[0].mxu0
    %1822 = vmatprep.mubr.f32.mxu0 0.0
    %1823 = vmatmul.mubr.f32.gmra.mrb[0].mxu0 %v1751
    %v1824 = vpop.f32.mrb[0].mxu0
    %v1825 = vadd.f32 0.0, %v1824
    %v1826 = vpop.f32.mrb[0].mxu0
    %1827 = vdwg.mxu0
    %v1828 = vadd.f32 %v1410, %v1820
    %v1829 = vadd.f32 %v1411, %v1825
    %v1830 = vld [vmem:[%s4] sm:$0x1]
    %v1832 = vlaneseq
    %v1833 = vshrl.u32 %v1832, 7
    %v1834 = vsub.s32 0, %v1833
    %v1835 = vrot.slane %v1830, %v1834
    %v1837 = vadd.f32 %v1828, %v1835
    %v1838 = vadd.f32 %v1829, %v1835
    %1839 = vst.msk [vmem:[#allocation8] sm:$0xff] %vm75, %v1837
    %1840 = vst.msk [vmem:[#allocation8 + $0x8] sm:$0xff] %vm75, %v1838
    // Predicated region
    $region34: #{tpu_custom_call.1} parent=1 // pred_check
      _
    $region35: #{tpu_custom_call.1} parent=1 // pred_check_branch
      %1842 = sbr.rel (0) target = $region37
    $region36: #{tpu_custom_call.1} parent=1 // pred_region
      %s1844 = ssub.s32 256, 256
      %1845 = vsyncadd [#allocation4], %s1844
      %s1846 = sshll.u32 [#allocation8], 4
      %s1847 = int_to_ptr.vmem [resolvable:$true] %s1846
      %1852 = dma.vmem_to_hbm [thread:$0]  %s1847, 256, %s5, [#allocation4], 128, 128, 8
    $region37: #{tpu_custom_call.1} parent=1 // pred_fallthru
      _
    // Predicated region
    $region38: #{tpu_custom_call.1} parent=1 // pred_check
      _
    $region39: #{tpu_custom_call.1} parent=1 // pred_check_branch
      %1854 = sbr.rel (0) target = $region41
    $region40: #{tpu_custom_call.1} parent=1 // pred_region
      %1855 = dma.done [#allocation4], 256
    $region41: #{tpu_custom_call.1} parent=1 // pred_fallthru
      _
    %1856 = vsyncpa [#allocation3], 1
    %1857 = vsyncpa [#allocation6], 1
    %1858 = vsyncpa [#allocation4], 1

</llo_original>
